<compile_context>
chip_gen: v7x
topology: tpu7x:2x2x1
jax: 0.10.0
libtpu: 0.0.40
codegen_flags: <defaults>
</compile_context>

<pallas_src>
import numpy as np
import jax
import jax.numpy as jnp
from jax.experimental import pallas as pl
from jax.experimental.pallas import tpu as pltpu

EPS = 1e-6

# column indices in the packed per-channel vector table (C, 15)
(_LN1_W, _LN1_B, _B1A, _B1B, _BDW_A, _BDW_B, _BSCA, _B3,
 _LN2_W, _LN2_B, _B4A, _B4B, _B5, _BETA, _GAMMA) = range(15)
# slice indices in the packed (7, C, C) bf16 weight stack
_W1A, _W1B, _W3, _W4A, _W4B, _W5, _WSCA = range(7)


def _make_extraction_kernel(H, W, C):
    HW = H * W

    def kernel(x_ref, wmats_ref, wdw_ref, vecs_ref, masks_ref, o_ref):
        x = x_ref[0].astype(jnp.float32)            # (C, HW), channel-major
        vecs = vecs_ref[...].astype(jnp.float32)    # (C, 15) per-channel vectors
        wdw = wdw_ref[...].astype(jnp.float32)      # (C, 18) depthwise taps (slab a | slab b)
        masks = masks_ref[...]                      # (2, HW) f32 column-validity masks
        col_mask = {-1: masks[0:1, :], 0: None, 1: masks[1:2, :]}

        def col(k):
            return vecs[:, k:k + 1]                 # (C, 1)

        inv_c = 1.0 / C

        def layernorm(v, w_col, b_col):
            # one-pass statistics: var = E[v^2] - mu^2 (single traversal of v)
            mu = jnp.sum(v, axis=0, keepdims=True) * inv_c
            ex2 = jnp.sum(v * v, axis=0, keepdims=True) * inv_c
            var = jnp.maximum(ex2 - mu * mu, 0.0)
            return (v - mu) * jax.lax.rsqrt(var + EPS) * w_col + b_col

        def mm(w_bf, v_bf, b_col):                  # bf16 MXU matmul, f32 accumulation
            return jnp.dot(w_bf, v_bf, preferred_element_type=jnp.float32) + b_col

        def dwconv3x3(h, tap0, b_col):
            # 3x3 depthwise conv with zero padding, accumulated in a value.
            zpad = jnp.zeros((C, W + 1), jnp.float32)
            hp = jnp.concatenate([zpad, h, zpad], axis=1)      # (C, HW + 2W + 2)
            acc = None
            for di in (-1, 0, 1):
                for dj in (-1, 0, 1):
                    t = tap0 + (di + 1) * 3 + (dj + 1)
                    s = di * W + dj
                    win = hp[:, W + 1 + s: W + 1 + s + HW]     # win[:, p] = h[:, p+s] (0 outside rows)
                    term = win * wdw[:, t:t + 1]
                    m = col_mask[dj]
                    if m is not None:
                        term = term * m                        # mask column wrap-around
                    acc = term if acc is None else acc + term
            return acc + b_col

        # ---- LN1 -> conv1 (C -> 2C, split into two aligned C->C slabs) ----
        xn_b = layernorm(x, col(_LN1_W), col(_LN1_B)).astype(jnp.bfloat16)
        h1a = mm(wmats_ref[_W1A], xn_b, col(_B1A))
        h1b = mm(wmats_ref[_W1B], xn_b, col(_B1B))

        # ---- 3x3 depthwise conv + SimpleGate (two aligned slabs) ----
        g = dwconv3x3(h1a, 0, col(_BDW_A)) * dwconv3x3(h1b, 9, col(_BDW_B))

        # ---- SCA: global average pool -> 1x1 matvec -> per-channel scale ----
        pooled = jnp.sum(g, axis=1, keepdims=True) * (1.0 / HW)           # (C, 1)
        att = jnp.dot(wmats_ref[_WSCA], pooled.astype(jnp.bfloat16),
                      preferred_element_type=jnp.float32) + col(_BSCA)

        # ---- conv3 + residual (beta) ----
        y = x + mm(wmats_ref[_W3], (g * att).astype(jnp.bfloat16), col(_B3)) * col(_BETA)
        # TODO(synk): dropout (drop_out_rate=0.0) is identity; not implemented.

        # ---- LN2 -> FFN (conv4 split, SimpleGate, conv5) + residual (gamma) ----
        yn_b = layernorm(y, col(_LN2_W), col(_LN2_B)).astype(jnp.bfloat16)
        f = mm(wmats_ref[_W4A], yn_b, col(_B4A)) * mm(wmats_ref[_W4B], yn_b, col(_B4B))
        z = mm(wmats_ref[_W5], f.astype(jnp.bfloat16), col(_B5))
        o_ref[0] = (y + z * col(_GAMMA)).astype(o_ref.dtype)

    return kernel


def pack_params(p):
    """Pack NAFBlock parameters into the three small arrays the kernel consumes."""
    C = p["w3"].shape[0]
    wmats = jnp.stack(
        [p["w1"][:C], p["w1"][C:], p["w3"],
         p["w4"][:C], p["w4"][C:], p["w5"], p["wsca"]], axis=0
    ).astype(jnp.bfloat16)                                                         # (7, C, C)
    wdw = jnp.concatenate([p["wdw"][:C], p["wdw"][C:]], axis=1).astype(jnp.float32)  # (C, 18)
    vecs = jnp.stack(
        [p["ln1_w"], p["ln1_b"], p["b1"][:C], p["b1"][C:],
         p["bdw"][:C], p["bdw"][C:], p["bsca"], p["b3"],
         p["ln2_w"], p["ln2_b"], p["b4"][:C], p["b4"][C:],
         p["b5"], p["beta"], p["gamma"]], axis=1
    ).astype(jnp.float32)                                                          # (C, 15)
    return {"wmats": wmats, "wdw": wdw, "vecs": vecs}


def extraction_block_forward(x_nchw, packed):
    """NAFBlock (extraction block) forward on an NCHW tensor via the Pallas kernel."""
    B, C, H, W = x_nchw.shape
    HW = H * W
    x_flat = x_nchw.reshape(B, C, HW)     # free reshape; no NCHW<->NHWC transpose

    # host-precomputed column-validity masks for the +/-1 horizontal taps
    cols = np.tile(np.arange(W, dtype=np.float32), H)
    col_masks = jnp.asarray(
        np.stack([(cols >= 1).astype(np.float32),
                  (cols <= W - 2).astype(np.float32)], axis=0))   # (2, HW)

    # modest, explicit scoped-VMEM budget (safe on v5e / v6e / v7x)
    cp = ((max(C, 8) + 7) // 8) * 8
    hwp = ((HW + 127) // 128) * 128
    vmem_limit = int(min(100 * 1024 * 1024,
                         max(32 * 1024 * 1024, 32 * 4 * cp * hwp)))

    kernel = _make_extraction_kernel(H, W, C)
    out = pl.pallas_call(
        kernel,
        out_shape=jax.ShapeDtypeStruct((B, C, HW), x_nchw.dtype),
        grid=(B,),
        in_specs=[
            pl.BlockSpec((1, C, HW), lambda b: (b, 0, 0)),
            pl.BlockSpec(packed["wmats"].shape, lambda b: (0, 0, 0)),
            pl.BlockSpec(packed["wdw"].shape, lambda b: (0, 0)),
            pl.BlockSpec(packed["vecs"].shape, lambda b: (0, 0)),
            pl.BlockSpec(col_masks.shape, lambda b: (0, 0)),
        ],
        out_specs=pl.BlockSpec((1, C, HW), lambda b: (b, 0, 0)),
        compiler_params=pltpu.CompilerParams(
            dimension_semantics=("parallel",),
            vmem_limit_bytes=vmem_limit,
        ),
    )(x_flat, packed["wmats"], packed["wdw"], packed["vecs"], col_masks)
    return out.reshape(B, C, H, W)


def stereo_block(feats, params):
    """Stereo_Block.forward: shared Extraction_Block applied to every view."""
    packed = pack_params(params)
    # TODO(synk): Fusion_Block (SCAM cross-view attention) is only built when
    # fusion=True; the default Stereo_Block has fusion=None, so it is omitted.
    return tuple(extraction_block_forward(x, packed) for x in feats)


# ---------------- pure-JAX reference (mirrors the bf16 matmul casts) ----------------
def reference_extraction(x, p):
    B, C, H, W = x.shape

    def ln(v, w, b):
        mu = jnp.mean(v, axis=1, keepdims=True)
        var = jnp.mean((v - mu) ** 2, axis=1, keepdims=True)
        return ((v - mu) * jax.lax.rsqrt(var + EPS) * w[None, :, None, None]
                + b[None, :, None, None])

    def conv1x1(v, w, b):
        out = jnp.einsum("oc,bchw->bohw", w.astype(jnp.bfloat16),
                         v.astype(jnp.bfloat16),
                         preferred_element_type=jnp.float32)
        return out + b[None, :, None, None]

    xn = ln(x, p["ln1_w"], p["ln1_b"])
    h1 = conv1x1(xn, p["w1"], p["b1"])                                # (B, 2C, H, W)
    hp = jnp.pad(h1, ((0, 0), (0, 0), (1, 1), (1, 1)))
    h2 = jnp.zeros_like(h1)
    for di in range(3):
        for dj in range(3):
            h2 = h2 + hp[:, :, di:di + H, dj:dj + W] * p["wdw"][:, di * 3 + dj][None, :, None, None]
    h2 = h2 + p["bdw"][None, :, None, None]
    g = h2[:, :C] * h2[:, C:]
    pooled = jnp.mean(g, axis=(2, 3), keepdims=True)
    att = jnp.einsum("oc,bcxy->boxy", p["wsca"].astype(jnp.bfloat16),
                     pooled.astype(jnp.bfloat16),
                     preferred_element_type=jnp.float32) + p["bsca"][None, :, None, None]
    g = g * att
    y = x + conv1x1(g, p["w3"], p["b3"]) * p["beta"][None, :, None, None]
    yn = ln(y, p["ln2_w"], p["ln2_b"])
    f = conv1x1(yn, p["w4"], p["b4"])
    f = f[:, :C] * f[:, C:]
    z = conv1x1(f, p["w5"], p["b5"])
    return y + z * p["gamma"][None, :, None, None]


def init_params(C, key):
    C2 = 2 * C
    ks = jax.random.split(key, 16)

    def rn(k, shape, scale):
        return scale * jax.random.normal(k, shape, jnp.float32)

    return {
        "ln1_w": 1.0 + rn(ks[0], (C,), 0.2), "ln1_b": rn(ks[1], (C,), 0.2),
        "w1": rn(ks[2], (C2, C), 0.5), "b1": rn(ks[3], (C2,), 0.1),
        "wdw": rn(ks[4], (C2, 9), 0.5), "bdw": rn(ks[5], (C2,), 0.1),
        "wsca": rn(ks[6], (C, C), 0.5), "bsca": rn(ks[7], (C,), 0.1),
        "w3": rn(ks[8], (C, C), 0.5), "b3": rn(ks[9], (C,), 0.1),
        "ln2_w": 1.0 + rn(ks[10], (C,), 0.2), "ln2_b": rn(ks[11], (C,), 0.2),
        "w4": rn(ks[12], (C2, C), 0.5), "b4": rn(ks[13], (C2,), 0.1),
        "w5": rn(ks[14], (C, C), 0.5), "b5": rn(ks[15], (C,), 0.1),
        "beta": rn(jax.random.fold_in(key, 1), (C,), 0.5),
        "gamma": rn(jax.random.fold_in(key, 2), (C,), 0.5),
    }


if __name__ == "__main__":
    B, C, H, W = 2, 4, 16, 16
    key = jax.random.PRNGKey(0)
    k_l, k_r, k_p = jax.random.split(key, 3)
    x_left = jax.random.normal(k_l, (B, C, H, W), jnp.float32)
    x_right = jax.random.normal(k_r, (B, C, H, W), jnp.float32)
    params = init_params(C, k_p)

    outs = stereo_block((x_left, x_right), params)
    outs = jax.block_until_ready(outs)

    refs = (reference_extraction(x_left, params),
            reference_extraction(x_right, params))
    for o, r in zip(outs, refs):
        assert o.shape == (B, C, H, W)
        assert jnp.allclose(o, r, atol=1e-2, rtol=1e-2), "mismatch vs reference"
    print("KERNEL_OK")
</pallas_src>

<mosaic_0001>
module attributes {stable_mosaic.version = 11 : i64} {
  func.func @kernel(%arg0: i32, %arg1: memref<1x4x256xf32, #tpu.memory_space<vmem>>, %arg2: memref<7x4x4xbf16, #tpu.memory_space<vmem>>, %arg3: memref<4x18xf32, #tpu.memory_space<vmem>>, %arg4: memref<4x15xf32, #tpu.memory_space<vmem>>, %arg5: memref<2x256xf32, #tpu.memory_space<vmem>>, %arg6: memref<1x4x256xf32, #tpu.memory_space<vmem>>) attributes {dimension_semantics = [#tpu.dimension_semantics<parallel>], iteration_bounds = array<i64: 2>, scalar_prefetch = 0 : i64, scratch_operands = 0 : i64, tpu.core_type = #tpu.core_type<tc>, window_params = [{transform_indices = @transform_0, window_bounds = array<i64: 1, 4, 256>}, {pipeline_mode = #tpu.pipeline_mode<synchronous>, transform_indices = @transform_1, window_bounds = array<i64: 7, 4, 4>}, {pipeline_mode = #tpu.pipeline_mode<synchronous>, transform_indices = @transform_2, window_bounds = array<i64: 4, 18>}, {pipeline_mode = #tpu.pipeline_mode<synchronous>, transform_indices = @transform_3, window_bounds = array<i64: 4, 15>}, {pipeline_mode = #tpu.pipeline_mode<synchronous>, transform_indices = @transform_4, window_bounds = array<i64: 2, 256>}, {transform_indices = @transform_5, window_bounds = array<i64: 1, 4, 256>}]} {
    %c0 = arith.constant 0 : index
    %c0_0 = arith.constant 0 : index
    %c0_1 = arith.constant 0 : index
    %0 = vector.load %arg1[%c0, %c0_0, %c0_1] : memref<1x4x256xf32, #tpu.memory_space<vmem>>, vector<1x4x256xf32>
    %1 = vector.shape_cast %0 : vector<1x4x256xf32> to vector<4x256xf32>
    %c0_2 = arith.constant 0 : index
    %c0_3 = arith.constant 0 : index
    %2 = vector.load %arg4[%c0_2, %c0_3] : memref<4x15xf32, #tpu.memory_space<vmem>>, vector<4x15xf32>
    %c0_4 = arith.constant 0 : index
    %c0_5 = arith.constant 0 : index
    %3 = vector.load %arg3[%c0_4, %c0_5] : memref<4x18xf32, #tpu.memory_space<vmem>>, vector<4x18xf32>
    %c0_6 = arith.constant 0 : index
    %c0_7 = arith.constant 0 : index
    %4 = vector.load %arg5[%c0_6, %c0_7] : memref<2x256xf32, #tpu.memory_space<vmem>>, vector<2x256xf32>
    %5 = vector.extract_strided_slice %4 {offsets = [0, 0], sizes = [1, 256], strides = [1, 1]} : vector<2x256xf32> to vector<1x256xf32>
    %6 = vector.extract_strided_slice %4 {offsets = [1, 0], sizes = [1, 256], strides = [1, 1]} : vector<2x256xf32> to vector<1x256xf32>
    %7 = vector.extract_strided_slice %2 {offsets = [0, 0], sizes = [4, 1], strides = [1, 1]} : vector<4x15xf32> to vector<4x1xf32>
    %8 = vector.extract_strided_slice %2 {offsets = [0, 1], sizes = [4, 1], strides = [1, 1]} : vector<4x15xf32> to vector<4x1xf32>
    %cst = arith.constant dense<0.000000e+00> : vector<256xf32>
    %9 = vector.multi_reduction <add>, %1, %cst [0] : vector<4x256xf32> to vector<256xf32>
    %10 = vector.shape_cast %9 : vector<256xf32> to vector<1x256xf32>
    %cst_8 = arith.constant 2.500000e-01 : f32
    %11 = vector.broadcast %cst_8 : f32 to vector<1x256xf32>
    %12 = arith.mulf %10, %11 : vector<1x256xf32>
    %13 = arith.mulf %1, %1 : vector<4x256xf32>
    %cst_9 = arith.constant dense<0.000000e+00> : vector<256xf32>
    %14 = vector.multi_reduction <add>, %13, %cst_9 [0] : vector<4x256xf32> to vector<256xf32>
    %15 = vector.shape_cast %14 : vector<256xf32> to vector<1x256xf32>
    %cst_10 = arith.constant 2.500000e-01 : f32
    %16 = vector.broadcast %cst_10 : f32 to vector<1x256xf32>
    %17 = arith.mulf %15, %16 : vector<1x256xf32>
    %18 = arith.mulf %12, %12 : vector<1x256xf32>
    %19 = arith.subf %17, %18 : vector<1x256xf32>
    %cst_11 = arith.constant 0.000000e+00 : f32
    %20 = vector.broadcast %cst_11 : f32 to vector<1x256xf32>
    %21 = arith.maximumf %19, %20 : vector<1x256xf32>
    %22 = vector.broadcast %12 : vector<1x256xf32> to vector<4x256xf32>
    %23 = arith.subf %1, %22 : vector<4x256xf32>
    %cst_12 = arith.constant 9.99999997E-7 : f32
    %24 = vector.broadcast %cst_12 : f32 to vector<1x256xf32>
    %25 = arith.addf %21, %24 : vector<1x256xf32>
    %26 = math.rsqrt %25 : vector<1x256xf32>
    %27 = vector.broadcast %26 : vector<1x256xf32> to vector<4x256xf32>
    %28 = arith.mulf %23, %27 : vector<4x256xf32>
    %29 = vector.broadcast %7 : vector<4x1xf32> to vector<4x256xf32>
    %30 = arith.mulf %28, %29 : vector<4x256xf32>
    %31 = vector.broadcast %8 : vector<4x1xf32> to vector<4x256xf32>
    %32 = arith.addf %30, %31 : vector<4x256xf32>
    %33 = arith.truncf %32 : vector<4x256xf32> to vector<4x256xbf16>
    %c0_13 = arith.constant 0 : index
    %c0_14 = arith.constant 0 : index
    %c0_15 = arith.constant 0 : index
    %34 = vector.load %arg2[%c0_13, %c0_14, %c0_15] : memref<7x4x4xbf16, #tpu.memory_space<vmem>>, vector<1x4x4xbf16>
    %35 = vector.shape_cast %34 : vector<1x4x4xbf16> to vector<4x4xbf16>
    %36 = vector.extract_strided_slice %2 {offsets = [0, 2], sizes = [4, 1], strides = [1, 1]} : vector<4x15xf32> to vector<4x1xf32>
    %cst_16 = arith.constant dense<0.000000e+00> : vector<4x256xf32>
    %37 = tpu.matmul %35, %33, %cst_16 {dimension_numbers = #tpu.dot_dimension_numbers<[1], [0], [0], [1], [0, 0, 1, 1], [], []>} : vector<4x4xbf16>, vector<4x256xbf16>, vector<4x256xf32> -> vector<4x256xf32>
    %38 = vector.broadcast %36 : vector<4x1xf32> to vector<4x256xf32>
    %39 = arith.addf %37, %38 : vector<4x256xf32>
    %c1 = arith.constant 1 : index
    %c0_17 = arith.constant 0 : index
    %c0_18 = arith.constant 0 : index
    %40 = vector.load %arg2[%c1, %c0_17, %c0_18] : memref<7x4x4xbf16, #tpu.memory_space<vmem>>, vector<1x4x4xbf16>
    %41 = vector.shape_cast %40 : vector<1x4x4xbf16> to vector<4x4xbf16>
    %42 = vector.extract_strided_slice %2 {offsets = [0, 3], sizes = [4, 1], strides = [1, 1]} : vector<4x15xf32> to vector<4x1xf32>
    %cst_19 = arith.constant dense<0.000000e+00> : vector<4x256xf32>
    %43 = tpu.matmul %41, %33, %cst_19 {dimension_numbers = #tpu.dot_dimension_numbers<[1], [0], [0], [1], [0, 0, 1, 1], [], []>} : vector<4x4xbf16>, vector<4x256xbf16>, vector<4x256xf32> -> vector<4x256xf32>
    %44 = vector.broadcast %42 : vector<4x1xf32> to vector<4x256xf32>
    %45 = arith.addf %43, %44 : vector<4x256xf32>
    %46 = vector.extract_strided_slice %2 {offsets = [0, 4], sizes = [4, 1], strides = [1, 1]} : vector<4x15xf32> to vector<4x1xf32>
    %cst_20 = arith.constant 0.000000e+00 : f32
    %47 = vector.broadcast %cst_20 : f32 to vector<4x17xf32>
    %48 = tpu.concatenate %47, %39, %47 in 1 : vector<4x17xf32>, vector<4x256xf32>, vector<4x17xf32> -> vector<4x290xf32>
    %49 = vector.extract_strided_slice %48 {offsets = [0, 0], sizes = [4, 256], strides = [1, 1]} : vector<4x290xf32> to vector<4x256xf32>
    %50 = vector.extract_strided_slice %3 {offsets = [0, 0], sizes = [4, 1], strides = [1, 1]} : vector<4x18xf32> to vector<4x1xf32>
    %51 = vector.broadcast %50 : vector<4x1xf32> to vector<4x256xf32>
    %52 = arith.mulf %49, %51 : vector<4x256xf32>
    %53 = vector.broadcast %5 : vector<1x256xf32> to vector<4x256xf32>
    %54 = arith.mulf %52, %53 : vector<4x256xf32>
    %55 = vector.extract_strided_slice %48 {offsets = [0, 1], sizes = [4, 256], strides = [1, 1]} : vector<4x290xf32> to vector<4x256xf32>
    %56 = vector.extract_strided_slice %3 {offsets = [0, 1], sizes = [4, 1], strides = [1, 1]} : vector<4x18xf32> to vector<4x1xf32>
    %57 = vector.broadcast %56 : vector<4x1xf32> to vector<4x256xf32>
    %58 = arith.mulf %55, %57 : vector<4x256xf32>
    %59 = arith.addf %54, %58 : vector<4x256xf32>
    %60 = vector.extract_strided_slice %48 {offsets = [0, 2], sizes = [4, 256], strides = [1, 1]} : vector<4x290xf32> to vector<4x256xf32>
    %61 = vector.extract_strided_slice %3 {offsets = [0, 2], sizes = [4, 1], strides = [1, 1]} : vector<4x18xf32> to vector<4x1xf32>
    %62 = vector.broadcast %61 : vector<4x1xf32> to vector<4x256xf32>
    %63 = arith.mulf %60, %62 : vector<4x256xf32>
    %64 = vector.broadcast %6 : vector<1x256xf32> to vector<4x256xf32>
    %65 = arith.mulf %63, %64 : vector<4x256xf32>
    %66 = arith.addf %59, %65 : vector<4x256xf32>
    %67 = vector.extract_strided_slice %48 {offsets = [0, 16], sizes = [4, 256], strides = [1, 1]} : vector<4x290xf32> to vector<4x256xf32>
    %68 = vector.extract_strided_slice %3 {offsets = [0, 3], sizes = [4, 1], strides = [1, 1]} : vector<4x18xf32> to vector<4x1xf32>
    %69 = vector.broadcast %68 : vector<4x1xf32> to vector<4x256xf32>
    %70 = arith.mulf %67, %69 : vector<4x256xf32>
    %71 = vector.broadcast %5 : vector<1x256xf32> to vector<4x256xf32>
    %72 = arith.mulf %70, %71 : vector<4x256xf32>
    %73 = arith.addf %66, %72 : vector<4x256xf32>
    %74 = vector.extract_strided_slice %48 {offsets = [0, 17], sizes = [4, 256], strides = [1, 1]} : vector<4x290xf32> to vector<4x256xf32>
    %75 = vector.extract_strided_slice %3 {offsets = [0, 4], sizes = [4, 1], strides = [1, 1]} : vector<4x18xf32> to vector<4x1xf32>
    %76 = vector.broadcast %75 : vector<4x1xf32> to vector<4x256xf32>
    %77 = arith.mulf %74, %76 : vector<4x256xf32>
    %78 = arith.addf %73, %77 : vector<4x256xf32>
    %79 = vector.extract_strided_slice %48 {offsets = [0, 18], sizes = [4, 256], strides = [1, 1]} : vector<4x290xf32> to vector<4x256xf32>
    %80 = vector.extract_strided_slice %3 {offsets = [0, 5], sizes = [4, 1], strides = [1, 1]} : vector<4x18xf32> to vector<4x1xf32>
    %81 = vector.broadcast %80 : vector<4x1xf32> to vector<4x256xf32>
    %82 = arith.mulf %79, %81 : vector<4x256xf32>
    %83 = vector.broadcast %6 : vector<1x256xf32> to vector<4x256xf32>
    %84 = arith.mulf %82, %83 : vector<4x256xf32>
    %85 = arith.addf %78, %84 : vector<4x256xf32>
    %86 = vector.extract_strided_slice %48 {offsets = [0, 32], sizes = [4, 256], strides = [1, 1]} : vector<4x290xf32> to vector<4x256xf32>
    %87 = vector.extract_strided_slice %3 {offsets = [0, 6], sizes = [4, 1], strides = [1, 1]} : vector<4x18xf32> to vector<4x1xf32>
    %88 = vector.broadcast %87 : vector<4x1xf32> to vector<4x256xf32>
    %89 = arith.mulf %86, %88 : vector<4x256xf32>
    %90 = vector.broadcast %5 : vector<1x256xf32> to vector<4x256xf32>
    %91 = arith.mulf %89, %90 : vector<4x256xf32>
    %92 = arith.addf %85, %91 : vector<4x256xf32>
    %93 = vector.extract_strided_slice %48 {offsets = [0, 33], sizes = [4, 256], strides = [1, 1]} : vector<4x290xf32> to vector<4x256xf32>
    %94 = vector.extract_strided_slice %3 {offsets = [0, 7], sizes = [4, 1], strides = [1, 1]} : vector<4x18xf32> to vector<4x1xf32>
    %95 = vector.broadcast %94 : vector<4x1xf32> to vector<4x256xf32>
    %96 = arith.mulf %93, %95 : vector<4x256xf32>
    %97 = arith.addf %92, %96 : vector<4x256xf32>
    %98 = vector.extract_strided_slice %48 {offsets = [0, 34], sizes = [4, 256], strides = [1, 1]} : vector<4x290xf32> to vector<4x256xf32>
    %99 = vector.extract_strided_slice %3 {offsets = [0, 8], sizes = [4, 1], strides = [1, 1]} : vector<4x18xf32> to vector<4x1xf32>
    %100 = vector.broadcast %99 : vector<4x1xf32> to vector<4x256xf32>
    %101 = arith.mulf %98, %100 : vector<4x256xf32>
    %102 = vector.broadcast %6 : vector<1x256xf32> to vector<4x256xf32>
    %103 = arith.mulf %101, %102 : vector<4x256xf32>
    %104 = arith.addf %97, %103 : vector<4x256xf32>
    %105 = vector.broadcast %46 : vector<4x1xf32> to vector<4x256xf32>
    %106 = arith.addf %104, %105 : vector<4x256xf32>
    %107 = vector.extract_strided_slice %2 {offsets = [0, 5], sizes = [4, 1], strides = [1, 1]} : vector<4x15xf32> to vector<4x1xf32>
    %cst_21 = arith.constant 0.000000e+00 : f32
    %108 = vector.broadcast %cst_21 : f32 to vector<4x17xf32>
    %109 = tpu.concatenate %108, %45, %108 in 1 : vector<4x17xf32>, vector<4x256xf32>, vector<4x17xf32> -> vector<4x290xf32>
    %110 = vector.extract_strided_slice %109 {offsets = [0, 0], sizes = [4, 256], strides = [1, 1]} : vector<4x290xf32> to vector<4x256xf32>
    %111 = vector.extract_strided_slice %3 {offsets = [0, 9], sizes = [4, 1], strides = [1, 1]} : vector<4x18xf32> to vector<4x1xf32>
    %112 = vector.broadcast %111 : vector<4x1xf32> to vector<4x256xf32>
    %113 = arith.mulf %110, %112 : vector<4x256xf32>
    %114 = vector.broadcast %5 : vector<1x256xf32> to vector<4x256xf32>
    %115 = arith.mulf %113, %114 : vector<4x256xf32>
    %116 = vector.extract_strided_slice %109 {offsets = [0, 1], sizes = [4, 256], strides = [1, 1]} : vector<4x290xf32> to vector<4x256xf32>
    %117 = vector.extract_strided_slice %3 {offsets = [0, 10], sizes = [4, 1], strides = [1, 1]} : vector<4x18xf32> to vector<4x1xf32>
    %118 = vector.broadcast %117 : vector<4x1xf32> to vector<4x256xf32>
    %119 = arith.mulf %116, %118 : vector<4x256xf32>
    %120 = arith.addf %115, %119 : vector<4x256xf32>
    %121 = vector.extract_strided_slice %109 {offsets = [0, 2], sizes = [4, 256], strides = [1, 1]} : vector<4x290xf32> to vector<4x256xf32>
    %122 = vector.extract_strided_slice %3 {offsets = [0, 11], sizes = [4, 1], strides = [1, 1]} : vector<4x18xf32> to vector<4x1xf32>
    %123 = vector.broadcast %122 : vector<4x1xf32> to vector<4x256xf32>
    %124 = arith.mulf %121, %123 : vector<4x256xf32>
    %125 = vector.broadcast %6 : vector<1x256xf32> to vector<4x256xf32>
    %126 = arith.mulf %124, %125 : vector<4x256xf32>
    %127 = arith.addf %120, %126 : vector<4x256xf32>
    %128 = vector.extract_strided_slice %109 {offsets = [0, 16], sizes = [4, 256], strides = [1, 1]} : vector<4x290xf32> to vector<4x256xf32>
    %129 = vector.extract_strided_slice %3 {offsets = [0, 12], sizes = [4, 1], strides = [1, 1]} : vector<4x18xf32> to vector<4x1xf32>
    %130 = vector.broadcast %129 : vector<4x1xf32> to vector<4x256xf32>
    %131 = arith.mulf %128, %130 : vector<4x256xf32>
    %132 = vector.broadcast %5 : vector<1x256xf32> to vector<4x256xf32>
    %133 = arith.mulf %131, %132 : vector<4x256xf32>
    %134 = arith.addf %127, %133 : vector<4x256xf32>
    %135 = vector.extract_strided_slice %109 {offsets = [0, 17], sizes = [4, 256], strides = [1, 1]} : vector<4x290xf32> to vector<4x256xf32>
    %136 = vector.extract_strided_slice %3 {offsets = [0, 13], sizes = [4, 1], strides = [1, 1]} : vector<4x18xf32> to vector<4x1xf32>
    %137 = vector.broadcast %136 : vector<4x1xf32> to vector<4x256xf32>
    %138 = arith.mulf %135, %137 : vector<4x256xf32>
    %139 = arith.addf %134, %138 : vector<4x256xf32>
    %140 = vector.extract_strided_slice %109 {offsets = [0, 18], sizes = [4, 256], strides = [1, 1]} : vector<4x290xf32> to vector<4x256xf32>
    %141 = vector.extract_strided_slice %3 {offsets = [0, 14], sizes = [4, 1], strides = [1, 1]} : vector<4x18xf32> to vector<4x1xf32>
    %142 = vector.broadcast %141 : vector<4x1xf32> to vector<4x256xf32>
    %143 = arith.mulf %140, %142 : vector<4x256xf32>
    %144 = vector.broadcast %6 : vector<1x256xf32> to vector<4x256xf32>
    %145 = arith.mulf %143, %144 : vector<4x256xf32>
    %146 = arith.addf %139, %145 : vector<4x256xf32>
    %147 = vector.extract_strided_slice %109 {offsets = [0, 32], sizes = [4, 256], strides = [1, 1]} : vector<4x290xf32> to vector<4x256xf32>
    %148 = vector.extract_strided_slice %3 {offsets = [0, 15], sizes = [4, 1], strides = [1, 1]} : vector<4x18xf32> to vector<4x1xf32>
    %149 = vector.broadcast %148 : vector<4x1xf32> to vector<4x256xf32>
    %150 = arith.mulf %147, %149 : vector<4x256xf32>
    %151 = vector.broadcast %5 : vector<1x256xf32> to vector<4x256xf32>
    %152 = arith.mulf %150, %151 : vector<4x256xf32>
    %153 = arith.addf %146, %152 : vector<4x256xf32>
    %154 = vector.extract_strided_slice %109 {offsets = [0, 33], sizes = [4, 256], strides = [1, 1]} : vector<4x290xf32> to vector<4x256xf32>
    %155 = vector.extract_strided_slice %3 {offsets = [0, 16], sizes = [4, 1], strides = [1, 1]} : vector<4x18xf32> to vector<4x1xf32>
    %156 = vector.broadcast %155 : vector<4x1xf32> to vector<4x256xf32>
    %157 = arith.mulf %154, %156 : vector<4x256xf32>
    %158 = arith.addf %153, %157 : vector<4x256xf32>
    %159 = vector.extract_strided_slice %109 {offsets = [0, 34], sizes = [4, 256], strides = [1, 1]} : vector<4x290xf32> to vector<4x256xf32>
    %160 = vector.extract_strided_slice %3 {offsets = [0, 17], sizes = [4, 1], strides = [1, 1]} : vector<4x18xf32> to vector<4x1xf32>
    %161 = vector.broadcast %160 : vector<4x1xf32> to vector<4x256xf32>
    %162 = arith.mulf %159, %161 : vector<4x256xf32>
    %163 = vector.broadcast %6 : vector<1x256xf32> to vector<4x256xf32>
    %164 = arith.mulf %162, %163 : vector<4x256xf32>
    %165 = arith.addf %158, %164 : vector<4x256xf32>
    %166 = vector.broadcast %107 : vector<4x1xf32> to vector<4x256xf32>
    %167 = arith.addf %165, %166 : vector<4x256xf32>
    %168 = arith.mulf %106, %167 : vector<4x256xf32>
    %cst_22 = arith.constant dense<0.000000e+00> : vector<4xf32>
    %169 = vector.multi_reduction <add>, %168, %cst_22 [1] : vector<4x256xf32> to vector<4xf32>
    %170 = vector.shape_cast %169 : vector<4xf32> to vector<4x1xf32>
    %cst_23 = arith.constant 3.906250e-03 : f32
    %171 = vector.broadcast %cst_23 : f32 to vector<4x1xf32>
    %172 = arith.mulf %170, %171 : vector<4x1xf32>
    %c6 = arith.constant 6 : index
    %c0_24 = arith.constant 0 : index
    %c0_25 = arith.constant 0 : index
    %173 = vector.load %arg2[%c6, %c0_24, %c0_25] : memref<7x4x4xbf16, #tpu.memory_space<vmem>>, vector<1x4x4xbf16>
    %174 = vector.shape_cast %173 : vector<1x4x4xbf16> to vector<4x4xbf16>
    %175 = arith.truncf %172 : vector<4x1xf32> to vector<4x1xbf16>
    %cst_26 = arith.constant dense<0.000000e+00> : vector<4x1xf32>
    %176 = tpu.matmul %174, %175, %cst_26 {dimension_numbers = #tpu.dot_dimension_numbers<[1], [0], [0], [1], [0, 0, 1, 1], [], []>} : vector<4x4xbf16>, vector<4x1xbf16>, vector<4x1xf32> -> vector<4x1xf32>
    %177 = vector.extract_strided_slice %2 {offsets = [0, 6], sizes = [4, 1], strides = [1, 1]} : vector<4x15xf32> to vector<4x1xf32>
    %178 = arith.addf %176, %177 : vector<4x1xf32>
    %c2 = arith.constant 2 : index
    %c0_27 = arith.constant 0 : index
    %c0_28 = arith.constant 0 : index
    %179 = vector.load %arg2[%c2, %c0_27, %c0_28] : memref<7x4x4xbf16, #tpu.memory_space<vmem>>, vector<1x4x4xbf16>
    %180 = vector.shape_cast %179 : vector<1x4x4xbf16> to vector<4x4xbf16>
    %181 = vector.broadcast %178 : vector<4x1xf32> to vector<4x256xf32>
    %182 = arith.mulf %168, %181 : vector<4x256xf32>
    %183 = arith.truncf %182 : vector<4x256xf32> to vector<4x256xbf16>
    %184 = vector.extract_strided_slice %2 {offsets = [0, 7], sizes = [4, 1], strides = [1, 1]} : vector<4x15xf32> to vector<4x1xf32>
    %cst_29 = arith.constant dense<0.000000e+00> : vector<4x256xf32>
    %185 = tpu.matmul %180, %183, %cst_29 {dimension_numbers = #tpu.dot_dimension_numbers<[1], [0], [0], [1], [0, 0, 1, 1], [], []>} : vector<4x4xbf16>, vector<4x256xbf16>, vector<4x256xf32> -> vector<4x256xf32>
    %186 = vector.broadcast %184 : vector<4x1xf32> to vector<4x256xf32>
    %187 = arith.addf %185, %186 : vector<4x256xf32>
    %188 = vector.extract_strided_slice %2 {offsets = [0, 13], sizes = [4, 1], strides = [1, 1]} : vector<4x15xf32> to vector<4x1xf32>
    %189 = vector.broadcast %188 : vector<4x1xf32> to vector<4x256xf32>
    %190 = arith.mulf %187, %189 : vector<4x256xf32>
    %191 = arith.addf %1, %190 : vector<4x256xf32>
    %192 = vector.extract_strided_slice %2 {offsets = [0, 8], sizes = [4, 1], strides = [1, 1]} : vector<4x15xf32> to vector<4x1xf32>
    %193 = vector.extract_strided_slice %2 {offsets = [0, 9], sizes = [4, 1], strides = [1, 1]} : vector<4x15xf32> to vector<4x1xf32>
    %cst_30 = arith.constant dense<0.000000e+00> : vector<256xf32>
    %194 = vector.multi_reduction <add>, %191, %cst_30 [0] : vector<4x256xf32> to vector<256xf32>
    %195 = vector.shape_cast %194 : vector<256xf32> to vector<1x256xf32>
    %cst_31 = arith.constant 2.500000e-01 : f32
    %196 = vector.broadcast %cst_31 : f32 to vector<1x256xf32>
    %197 = arith.mulf %195, %196 : vector<1x256xf32>
    %198 = arith.mulf %191, %191 : vector<4x256xf32>
    %cst_32 = arith.constant dense<0.000000e+00> : vector<256xf32>
    %199 = vector.multi_reduction <add>, %198, %cst_32 [0] : vector<4x256xf32> to vector<256xf32>
    %200 = vector.shape_cast %199 : vector<256xf32> to vector<1x256xf32>
    %cst_33 = arith.constant 2.500000e-01 : f32
    %201 = vector.broadcast %cst_33 : f32 to vector<1x256xf32>
    %202 = arith.mulf %200, %201 : vector<1x256xf32>
    %203 = arith.mulf %197, %197 : vector<1x256xf32>
    %204 = arith.subf %202, %203 : vector<1x256xf32>
    %cst_34 = arith.constant 0.000000e+00 : f32
    %205 = vector.broadcast %cst_34 : f32 to vector<1x256xf32>
    %206 = arith.maximumf %204, %205 : vector<1x256xf32>
    %207 = vector.broadcast %197 : vector<1x256xf32> to vector<4x256xf32>
    %208 = arith.subf %191, %207 : vector<4x256xf32>
    %cst_35 = arith.constant 9.99999997E-7 : f32
    %209 = vector.broadcast %cst_35 : f32 to vector<1x256xf32>
    %210 = arith.addf %206, %209 : vector<1x256xf32>
    %211 = math.rsqrt %210 : vector<1x256xf32>
    %212 = vector.broadcast %211 : vector<1x256xf32> to vector<4x256xf32>
    %213 = arith.mulf %208, %212 : vector<4x256xf32>
    %214 = vector.broadcast %192 : vector<4x1xf32> to vector<4x256xf32>
    %215 = arith.mulf %213, %214 : vector<4x256xf32>
    %216 = vector.broadcast %193 : vector<4x1xf32> to vector<4x256xf32>
    %217 = arith.addf %215, %216 : vector<4x256xf32>
    %218 = arith.truncf %217 : vector<4x256xf32> to vector<4x256xbf16>
    %c3 = arith.constant 3 : index
    %c0_36 = arith.constant 0 : index
    %c0_37 = arith.constant 0 : index
    %219 = vector.load %arg2[%c3, %c0_36, %c0_37] : memref<7x4x4xbf16, #tpu.memory_space<vmem>>, vector<1x4x4xbf16>
    %220 = vector.shape_cast %219 : vector<1x4x4xbf16> to vector<4x4xbf16>
    %221 = vector.extract_strided_slice %2 {offsets = [0, 10], sizes = [4, 1], strides = [1, 1]} : vector<4x15xf32> to vector<4x1xf32>
    %cst_38 = arith.constant dense<0.000000e+00> : vector<4x256xf32>
    %222 = tpu.matmul %220, %218, %cst_38 {dimension_numbers = #tpu.dot_dimension_numbers<[1], [0], [0], [1], [0, 0, 1, 1], [], []>} : vector<4x4xbf16>, vector<4x256xbf16>, vector<4x256xf32> -> vector<4x256xf32>
    %223 = vector.broadcast %221 : vector<4x1xf32> to vector<4x256xf32>
    %224 = arith.addf %222, %223 : vector<4x256xf32>
    %c4 = arith.constant 4 : index
    %c0_39 = arith.constant 0 : index
    %c0_40 = arith.constant 0 : index
    %225 = vector.load %arg2[%c4, %c0_39, %c0_40] : memref<7x4x4xbf16, #tpu.memory_space<vmem>>, vector<1x4x4xbf16>
    %226 = vector.shape_cast %225 : vector<1x4x4xbf16> to vector<4x4xbf16>
    %227 = vector.extract_strided_slice %2 {offsets = [0, 11], sizes = [4, 1], strides = [1, 1]} : vector<4x15xf32> to vector<4x1xf32>
    %cst_41 = arith.constant dense<0.000000e+00> : vector<4x256xf32>
    %228 = tpu.matmul %226, %218, %cst_41 {dimension_numbers = #tpu.dot_dimension_numbers<[1], [0], [0], [1], [0, 0, 1, 1], [], []>} : vector<4x4xbf16>, vector<4x256xbf16>, vector<4x256xf32> -> vector<4x256xf32>
    %229 = vector.broadcast %227 : vector<4x1xf32> to vector<4x256xf32>
    %230 = arith.addf %228, %229 : vector<4x256xf32>
    %231 = arith.mulf %224, %230 : vector<4x256xf32>
    %c5 = arith.constant 5 : index
    %c0_42 = arith.constant 0 : index
    %c0_43 = arith.constant 0 : index
    %232 = vector.load %arg2[%c5, %c0_42, %c0_43] : memref<7x4x4xbf16, #tpu.memory_space<vmem>>, vector<1x4x4xbf16>
    %233 = vector.shape_cast %232 : vector<1x4x4xbf16> to vector<4x4xbf16>
    %234 = arith.truncf %231 : vector<4x256xf32> to vector<4x256xbf16>
    %235 = vector.extract_strided_slice %2 {offsets = [0, 12], sizes = [4, 1], strides = [1, 1]} : vector<4x15xf32> to vector<4x1xf32>
    %cst_44 = arith.constant dense<0.000000e+00> : vector<4x256xf32>
    %236 = tpu.matmul %233, %234, %cst_44 {dimension_numbers = #tpu.dot_dimension_numbers<[1], [0], [0], [1], [0, 0, 1, 1], [], []>} : vector<4x4xbf16>, vector<4x256xbf16>, vector<4x256xf32> -> vector<4x256xf32>
    %237 = vector.broadcast %235 : vector<4x1xf32> to vector<4x256xf32>
    %238 = arith.addf %236, %237 : vector<4x256xf32>
    %239 = vector.extract_strided_slice %2 {offsets = [0, 14], sizes = [4, 1], strides = [1, 1]} : vector<4x15xf32> to vector<4x1xf32>
    %240 = vector.broadcast %239 : vector<4x1xf32> to vector<4x256xf32>
    %241 = arith.mulf %238, %240 : vector<4x256xf32>
    %242 = arith.addf %191, %241 : vector<4x256xf32>
    %c0_45 = arith.constant 0 : index
    %c0_46 = arith.constant 0 : index
    %c0_47 = arith.constant 0 : index
    %243 = vector.load %arg6[%c0_45, %c0_46, %c0_47] : memref<1x4x256xf32, #tpu.memory_space<vmem>>, vector<1x4x256xf32>
    %244 = vector.shape_cast %243 : vector<1x4x256xf32> to vector<4x256xf32>
    %245 = vector.shape_cast %242 : vector<4x256xf32> to vector<1x4x256xf32>
    tpu.vector_store %arg6[%c0_45, %c0_46, %c0_47], %245 {strides = array<i32>} : memref<1x4x256xf32, #tpu.memory_space<vmem>>, vector<1x4x256xf32>,
    return
  }
  func.func @transform_0(%arg0: i32) -> (i32, i32, i32) {
    %c0_i32 = arith.constant 0 : i32
    %c0_i32_0 = arith.constant 0 : i32
    %c0_i32_1 = arith.constant 0 : i32
    return %arg0, %c0_i32, %c0_i32_0 : i32, i32, i32
  }
  func.func @transform_1(%arg0: i32) -> (i32, i32, i32) {
    %c0_i32 = arith.constant 0 : i32
    %c0_i32_0 = arith.constant 0 : i32
    %c0_i32_1 = arith.constant 0 : i32
    %c0_i32_2 = arith.constant 0 : i32
    return %c0_i32, %c0_i32_0, %c0_i32_1 : i32, i32, i32
  }
  func.func @transform_2(%arg0: i32) -> (i32, i32) {
    %c0_i32 = arith.constant 0 : i32
    %c0_i32_0 = arith.constant 0 : i32
    %c0_i32_1 = arith.constant 0 : i32
    return %c0_i32, %c0_i32_0 : i32, i32
  }
  func.func @transform_3(%arg0: i32) -> (i32, i32) {
    %c0_i32 = arith.constant 0 : i32
    %c0_i32_0 = arith.constant 0 : i32
    %c0_i32_1 = arith.constant 0 : i32
    return %c0_i32, %c0_i32_0 : i32, i32
  }
  func.func @transform_4(%arg0: i32) -> (i32, i32) {
    %c0_i32 = arith.constant 0 : i32
    %c0_i32_0 = arith.constant 0 : i32
    %c0_i32_1 = arith.constant 0 : i32
    return %c0_i32, %c0_i32_0 : i32, i32
  }
  func.func @transform_5(%arg0: i32) -> (i32, i32, i32) {
    %c0_i32 = arith.constant 0 : i32
    %c0_i32_0 = arith.constant 0 : i32
    %c0_i32_1 = arith.constant 0 : i32
    return %arg0, %c0_i32, %c0_i32_0 : i32, i32, i32
  }
}

</mosaic_0001>

<llo_original>
// kernel: tpu_custom_call.1
$region0: #{tpu_custom_call.1}
  #allocation0 [shape = 'u32[]', space=smem, size = 0x4, offset = 0x4, fixed_abs, tag = 'smem constant byte address 0x4 - core index']
  #allocation1 [shape = 'u32[144,128]{1,0:T(1,128)}', space=vmem, size = 0x12000, scoped, tag = 'internal scratch']
  %s0 = inlined_call_operand.vmem [shape: f32[2,4,256], index: 0, kind: input, shape index: {}]
  %s1 = inlined_call_operand.vmem [shape: bf16[7,4,4], index: 1, kind: input, shape index: {}]
  %s2 = inlined_call_operand.vmem [shape: f32[4,18], index: 2, kind: input, shape index: {}]
  %s3 = inlined_call_operand.vmem [shape: f32[4,15], index: 3, kind: input, shape index: {}]
  %s4 = inlined_call_operand.vmem [shape: f32[2,256], index: 4, kind: input, shape index: {}]
  %s5 = inlined_call_operand.hbm [shape: f32[2,4,256], index: 5, kind: output, shape index: {}]
  %s6 = sld [smem:[#allocation0]]
  $region53: #{tpu_custom_call.1} parent=0
    _
  %s8 = ssub.s32 1, %s6
  %s9 = scalar_select 0, %s8, %s6
  $region1: #{tpu_custom_call.1} parent=0
    #allocation2 [shape = 'u8[8192]{0}', space=vmem, size = 0x2000, scoped, tag = 'output window, operand 0']
    #allocation3 [shape = 's32[2]{0}', space=sflag, size = 0x8, scoped, tag = 'scoped memory for tpu_custom_call.1']
    %10 = vsyncpa [#allocation3], 0
    %s11 = scalar_lea.sflag [#allocation3], 1
    %12 = vsyncpa %s11, 0
    loop: start=0, step=1, limit=4
    $region2: #{tpu_custom_call.1} parent=1 // loop_pre_header
      _
    $region3: #{tpu_custom_call.1} parent=1 // loop_header
      %s14 = sphi 0, %s18
      %p15 = scmp.ge.s32.totalorder %s14, 4
      %s24 = sphi 0, %s26
      %s27 = sphi 0, %s24
      %s28 = sphi 0, %s27
      %s44 = sphi 0, %s28
      %s48 = sphi 0, %s48
      %s50 = sphi 0, %s48
      %s51 = sphi 0, %s50
      %s65 = sphi 0, %s51
      %s69 = sphi 0, %s69
      %s71 = sphi 0, %s69
      %s72 = sphi 0, %s71
      %s86 = sphi 0, %s72
      %s90 = sphi 0, %s90
      %s92 = sphi 0, %s90
      %s93 = sphi 0, %s92
      %s107 = sphi 0, %s93
      %s111 = sphi 0, %s111
      %s113 = sphi 0, %s111
      %s114 = sphi 0, %s113
      %s128 = sphi 0, %s114
      %s134 = sphi 0, %s136
      %s137 = sphi 0, %s134
      %s138 = sphi 0, %s137
      %s154 = sphi 0, %s138
    $region4: #{tpu_custom_call.1} parent=1 // loop_header_branch
      %17 = sbr.rel (%p15) target = $region8
    $region5: #{tpu_custom_call.1} parent=1 // loop_body
      %s19 = ssub.s32 %s14, 1
      %s20 = ssub.s32 %s14, 2
      %s21 = sadd.s32 %s14, 1
      %s22 = ssub.s32 %s14, %s21
      %p23 = scmp.eq.s32.totalorder %s22, 0
      %s25 = sadd.s32 %s24, 1
      %s26 = scalar_select %p23, %s24, %s25
      %p29 = pneg %p23
      %p30 = scmp.eq.s32.totalorder %s14, 1
      %p31 = por %p29, %p30
      %p32 = scmp.ne.s32.totalorder %s24, %s27
      %p33 = scmp.eq.s32.totalorder %s14, 0
      %p34 = por %p32, %p33
      %p35 = scmp.ne.s32.totalorder %s24, %s27
      %p36 = scmp.eq.s32.totalorder %s19, 1
      %p37 = por %p35, %p36
      %p38 = scmp.ne.s32.totalorder %s27, %s28
      %p39 = scmp.eq.s32.totalorder %s19, 0
      %p40 = por %p38, %p39
      %p41 = scmp.ne.s32.totalorder %s27, %s28
      %p42 = scmp.eq.s32.totalorder %s20, 1
      %p43 = por %p41, %p42
      %p45 = scmp.ne.s32.totalorder %s28, %s44
      %p46 = scmp.eq.s32.totalorder %s20, 0
      %p47 = por %p45, %p46
      %s49 = sadd.s32 %s48, 1
      %p52 = scmp.eq.s32.totalorder %s14, 1
      %p53 = scmp.ne.s32.totalorder %s48, %s50
      %p54 = scmp.eq.s32.totalorder %s14, 0
      %p55 = por %p53, %p54
      %p56 = scmp.ne.s32.totalorder %s48, %s50
      %p57 = scmp.eq.s32.totalorder %s19, 1
      %p58 = por %p56, %p57
      %p59 = scmp.ne.s32.totalorder %s50, %s51
      %p60 = scmp.eq.s32.totalorder %s19, 0
      %p61 = por %p59, %p60
      %p62 = scmp.ne.s32.totalorder %s50, %s51
      %p63 = scmp.eq.s32.totalorder %s20, 1
      %p64 = por %p62, %p63
      %p66 = scmp.ne.s32.totalorder %s51, %s65
      %p67 = scmp.eq.s32.totalorder %s20, 0
      %p68 = por %p66, %p67
      %s70 = sadd.s32 %s69, 1
      %p73 = scmp.eq.s32.totalorder %s14, 1
      %p74 = scmp.ne.s32.totalorder %s69, %s71
      %p75 = scmp.eq.s32.totalorder %s14, 0
      %p76 = por %p74, %p75
      %p77 = scmp.ne.s32.totalorder %s69, %s71
      %p78 = scmp.eq.s32.totalorder %s19, 1
      %p79 = por %p77, %p78
      %p80 = scmp.ne.s32.totalorder %s71, %s72
      %p81 = scmp.eq.s32.totalorder %s19, 0
      %p82 = por %p80, %p81
      %p83 = scmp.ne.s32.totalorder %s71, %s72
      %p84 = scmp.eq.s32.totalorder %s20, 1
      %p85 = por %p83, %p84
      %p87 = scmp.ne.s32.totalorder %s72, %s86
      %p88 = scmp.eq.s32.totalorder %s20, 0
      %p89 = por %p87, %p88
      %s91 = sadd.s32 %s90, 1
      %p94 = scmp.eq.s32.totalorder %s14, 1
      %p95 = scmp.ne.s32.totalorder %s90, %s92
      %p96 = scmp.eq.s32.totalorder %s14, 0
      %p97 = por %p95, %p96
      %p98 = scmp.ne.s32.totalorder %s90, %s92
      %p99 = scmp.eq.s32.totalorder %s19, 1
      %p100 = por %p98, %p99
      %p101 = scmp.ne.s32.totalorder %s92, %s93
      %p102 = scmp.eq.s32.totalorder %s19, 0
      %p103 = por %p101, %p102
      %p104 = scmp.ne.s32.totalorder %s92, %s93
      %p105 = scmp.eq.s32.totalorder %s20, 1
      %p106 = por %p104, %p105
      %p108 = scmp.ne.s32.totalorder %s93, %s107
      %p109 = scmp.eq.s32.totalorder %s20, 0
      %p110 = por %p108, %p109
      %s112 = sadd.s32 %s111, 1
      %p115 = scmp.eq.s32.totalorder %s14, 1
      %p116 = scmp.ne.s32.totalorder %s111, %s113
      %p117 = scmp.eq.s32.totalorder %s14, 0
      %p118 = por %p116, %p117
      %p119 = scmp.ne.s32.totalorder %s111, %s113
      %p120 = scmp.eq.s32.totalorder %s19, 1
      %p121 = por %p119, %p120
      %p122 = scmp.ne.s32.totalorder %s113, %s114
      %p123 = scmp.eq.s32.totalorder %s19, 0
      %p124 = por %p122, %p123
      %p125 = scmp.ne.s32.totalorder %s113, %s114
      %p126 = scmp.eq.s32.totalorder %s20, 1
      %p127 = por %p125, %p126
      %p129 = scmp.ne.s32.totalorder %s114, %s128
      %p130 = scmp.eq.s32.totalorder %s20, 0
      %p131 = por %p129, %p130
      %s132 = ssub.s32 %s14, %s21
      %p133 = scmp.eq.s32.totalorder %s132, 0
      %s135 = sadd.s32 %s134, 1
      %s136 = scalar_select %p133, %s134, %s135
      %p139 = pneg %p133
      %p140 = scmp.eq.s32.totalorder %s14, 1
      %p141 = por %p139, %p140
      %p142 = scmp.ne.s32.totalorder %s134, %s137
      %p143 = scmp.eq.s32.totalorder %s14, 0
      %p144 = por %p142, %p143
      %p145 = scmp.ne.s32.totalorder %s134, %s137
      %p146 = scmp.eq.s32.totalorder %s19, 1
      %p147 = por %p145, %p146
      %p148 = scmp.ne.s32.totalorder %s137, %s138
      %p149 = scmp.eq.s32.totalorder %s19, 0
      %p150 = por %p148, %p149
      %p151 = scmp.ne.s32.totalorder %s137, %s138
      %p152 = scmp.eq.s32.totalorder %s20, 1
      %p153 = por %p151, %p152
      %p155 = scmp.ne.s32.totalorder %s138, %s154
      %p156 = scmp.eq.s32.totalorder %s20, 0
      %p157 = por %p155, %p156
      %p158 = scmp.le.s32.totalorder 1, %s14
      %p159 = scmp.lt.s32.totalorder %s14, 3
      %p160 = pnand %p158, %p159
      %p161 = pneg %p160
      // Predicated region
      $region9: #{tpu_custom_call.1} parent=5 // pred_check
        _
      $region10: #{tpu_custom_call.1} parent=5 // pred_check_branch
        %163 = sbr.rel (%p160) target = $region12
      $region11: #{tpu_custom_call.1} parent=5 // pred_region
        %s164 = ssub.s32 %s14, 1
        // Predicated region
        $region13: #{tpu_custom_call.1} parent=11 // pred_check
          %p165 = pneg %p61
        $region14: #{tpu_custom_call.1} parent=11 // pred_check_branch
          %167 = sbr.rel (%p165) target = $region16
        $region15: #{tpu_custom_call.1} parent=11 // pred_region
          _
        $region16: #{tpu_custom_call.1} parent=11 // pred_fallthru
          _
        // Predicated region
        $region17: #{tpu_custom_call.1} parent=11 // pred_check
          %p168 = pneg %p82
        $region18: #{tpu_custom_call.1} parent=11 // pred_check_branch
          %170 = sbr.rel (%p168) target = $region20
        $region19: #{tpu_custom_call.1} parent=11 // pred_region
          _
        $region20: #{tpu_custom_call.1} parent=11 // pred_fallthru
          _
        // Predicated region
        $region21: #{tpu_custom_call.1} parent=11 // pred_check
          %p171 = pneg %p103
        $region22: #{tpu_custom_call.1} parent=11 // pred_check_branch
          %173 = sbr.rel (%p171) target = $region24
        $region23: #{tpu_custom_call.1} parent=11 // pred_region
          _
        $region24: #{tpu_custom_call.1} parent=11 // pred_fallthru
          _
        // Predicated region
        $region25: #{tpu_custom_call.1} parent=11 // pred_check
          %p174 = pneg %p124
        $region26: #{tpu_custom_call.1} parent=11 // pred_check_branch
          %176 = sbr.rel (%p174) target = $region28
        $region27: #{tpu_custom_call.1} parent=11 // pred_region
          _
        $region28: #{tpu_custom_call.1} parent=11 // pred_fallthru
          _
      $region12: #{tpu_custom_call.1} parent=5 // pred_fallthru
        _
      %p177 = scmp.lt.s32.totalorder %s14, 2
      // Predicated region
      $region29: #{tpu_custom_call.1} parent=5 // pred_check
        %p178 = pneg %p177
      $region30: #{tpu_custom_call.1} parent=5 // pred_check_branch
        %180 = sbr.rel (%p178) target = $region32
      $region31: #{tpu_custom_call.1} parent=5 // pred_region
        // Predicated region
        $region33: #{tpu_custom_call.1} parent=31 // pred_check
          %p181 = pneg %p34
        $region34: #{tpu_custom_call.1} parent=31 // pred_check_branch
          %183 = sbr.rel (%p181) target = $region36
        $region35: #{tpu_custom_call.1} parent=31 // pred_region
          %p184 = scmp.lt.s32.totalorder %s14, 1
          %s185 = scalar_select %p184, %s14, 1
          %s186 = smul.addr %s185, 2
          %s187 = smul.addr %s186, 4
          %s188 = scalar_lea.vmem %s0, %s187
        $region36: #{tpu_custom_call.1} parent=31 // pred_fallthru
          _
      $region32: #{tpu_custom_call.1} parent=5 // pred_fallthru
        _
      %p189 = scmp.le.s32.totalorder 1, %s14
      %p190 = scmp.lt.s32.totalorder %s14, 3
      %p191 = pnand %p189, %p190
      %p192 = pneg %p191
      // Predicated region
      $region37: #{tpu_custom_call.1} parent=5 // pred_check
        _
      $region38: #{tpu_custom_call.1} parent=5 // pred_check_branch
        %194 = sbr.rel (%p191) target = $region40
      $region39: #{tpu_custom_call.1} parent=5 // pred_region
        %s195 = ssub.s32 %s14, 1
        %p196 = scmp.lt.s32.totalorder %s19, 1
        %s197 = scalar_select %p196, %s19, 1
        %s198 = smul.addr %s197, 2
        %s199 = smul.addr %s198, 4
        %s200 = scalar_lea.vmem %s0, %s199
        %p201 = pneg %p40
        %p202 = pneg %p37
        %p203 = pneg %p61
        %p204 = pneg %p58
        %p205 = pneg %p82
        %p206 = pneg %p79
        %p207 = pneg %p103
        %p208 = pneg %p100
        %p209 = pneg %p124
        %p210 = pneg %p121
        %p211 = pneg %p150
        %p212 = pneg %p147
        %s213 = sand.u32 %s137, 1
        %s214 = scalar_lea.sflag [#allocation3], %s213
        %s215 = sand.u32 %s137, 1
        %s216 = smul.addr %s215, 8
        %s217 = scalar_lea.vmem [#allocation2], %s216
        %p218 = scmp.lt.s32.totalorder %s19, 1
        %s219 = scalar_select %p218, %s19, 1
        %s220 = smul.addr %s219, 2
        %s221 = smul.addr %s220, 4
        %s222 = scalar_lea.vmem %s0, %s221
        %v224 = vld [vmem:[%s222] sm:$0xff]
        %v225 = vld [vmem:[%s3] sm:$0xf]
        %v226 = vld [vmem:[%s2] sm:$0xf]
        %v227 = vld [vmem:[%s4] sm:$0xf]
        %v229 = vcombine.high %v224, %v224
        %vm231 = vcmask 1043456
        %v232 = vsel %vm231, %v224, 0.0
        %v233 = vrot.slane %v232, 4
        %v234 = vadd.f32 %v232, %v233
        %v235 = vrot.slane %v234, 2
        %v236 = vadd.f32 %v234, %v235
        %v237 = vrot.slane %v236, 1
        %v238 = vadd.f32 %v236, %v237
        %v239 = vsel %vm231, %v229, 0.0
        %v240 = vrot.slane %v239, 4
        %v241 = vadd.f32 %v239, %v240
        %v242 = vrot.slane %v241, 2
        %v243 = vadd.f32 %v241, %v242
        %v244 = vrot.slane %v243, 1
        %v245 = vadd.f32 %v243, %v244
        %v246 = vmul.f32 %v238, 0.25
        %v247 = vmul.f32 %v245, 0.25
        %v248 = vmul.f32 %v224, %v224
        %v250 = vcombine.high %v248, %v248
        %v252 = vsel %vm231, %v248, 0.0
        %v253 = vrot.slane %v252, 4
        %v254 = vadd.f32 %v252, %v253
        %v255 = vrot.slane %v254, 2
        %v256 = vadd.f32 %v254, %v255
        %v257 = vrot.slane %v256, 1
        %v258 = vadd.f32 %v256, %v257
        %v259 = vsel %vm231, %v250, 0.0
        %v260 = vrot.slane %v259, 4
        %v261 = vadd.f32 %v259, %v260
        %v262 = vrot.slane %v261, 2
        %v263 = vadd.f32 %v261, %v262
        %v264 = vrot.slane %v263, 1
        %v265 = vadd.f32 %v263, %v264
        %v266 = vmul.f32 %v258, 0.25
        %v267 = vmul.f32 %v265, 0.25
        %v268 = vmul.f32 %v246, %v246
        %v269 = vmul.f32 %v247, %v247
        %v270 = vsub.f32 %v266, %v268
        %v271 = vsub.f32 %v267, %v269
        %v272 = vmax.f32 %v270, 0.0
        %v273 = vmax.f32 %v271, 0.0
        %v276 = vcombine.low %v246, %v247
        %v278 = vsub.f32 %v224, %v276
        %v279 = vadd.f32 %v272, 1e-06
        %v280 = vadd.f32 %v273, 1e-06
        %v281 = vrsqrt.pop %v279
        %v282 = vrsqrt.pop %v280
        %v285 = vcombine.low %v281, %v282
        %v287 = vmul.f32 %v278, %v285
        %289 = vset.pattern.permute.xlu0 0
        %290 = vperm.xlu0 %289, %v225
        %v291 = vpop.permute.xlu0 %290
        %v293 = vunpack.c.l.s4 839922192
        %v294 = vunpack.c.0.s8 %v293
        %v295 = vlaneseq
        %v296 = vshrl.u32 %v295, 7
        %v297 = vsub.s32 %v294, %v296
        %v298 = vrot.slane %v291, %v297
        %v300 = vmul.f32 %v287, %v298
        %301 = vset.pattern.permute.xlu0 1
        %302 = vperm.xlu0 %301, %v225
        %v303 = vpop.permute.xlu0 %302
        %v305 = vunpack.c.l.s4 839922192
        %v306 = vunpack.c.0.s8 %v305
        %v307 = vlaneseq
        %v308 = vshrl.u32 %v307, 7
        %v309 = vsub.s32 %v306, %v308
        %v310 = vrot.slane %v303, %v309
        %v312 = vadd.f32 %v300, %v310
        %v314 = vcombine.high %v312, %v312
        %v316 = vpack.c.bf16 %v312, %v312
        %v317 = vpack.c.bf16 %v314, %v314
        %v318 = vld [vmem:[%s1] sm:$0x3]
        %319 = vset.pattern.permute.xlu0 2
        %320 = vperm.xlu0 %319, %v225
        %v321 = vpop.permute.xlu0 %320
        %vm323 = vcmask 31744
        %v325 = vsel %vm323, %v318, 0
        %vm327 = vcmask 1041408
        %v329 = vsel %vm327, %v316, 0
        %v332 = vsel %vm327, %v317, 0
        %334 = vmatprep.subr.bf16.mxu0 %v332
        %335 = vmatpush1.bf16.msra.mxu0 %v329
        %336 = vmatprep.subr.bf16.mxu0 0
        %337 = vmatpush1.bf16.msra.mxu0 0
        %338 = vmatprep.subr.bf16.mxu0 0
        %339 = vmatpush1.bf16.msra.mxu0 0
        %340 = vmatprep.subr.bf16.mxu0 0
        %341 = vmatpush1.bf16.msra.mxu0 0
        %342 = vmatprep.subr.bf16.mxu0 0
        %343 = vmatpush1.bf16.msra.mxu0 0
        %344 = vmatprep.subr.bf16.mxu0 0
        %345 = vmatpush1.bf16.msra.mxu0 0
        %346 = vmatprep.subr.bf16.mxu0 0
        %347 = vmatpush1.bf16.msra.mxu0 0
        %348 = vmatprep.subr.bf16.mxu0 0
        %349 = vmatpush1.bf16.msra.mxu0 0
        %350 = vmatprep.subr.bf16.mxu0 0
        %351 = vmatpush1.bf16.msra.mxu0 0
        %352 = vmatprep.subr.bf16.mxu0 0
        %353 = vmatpush1.bf16.msra.mxu0 0
        %354 = vmatprep.subr.bf16.mxu0 0
        %355 = vmatpush1.bf16.msra.mxu0 0
        %356 = vmatprep.subr.bf16.mxu0 0
        %357 = vmatpush1.bf16.msra.mxu0 0
        %358 = vmatprep.subr.bf16.mxu0 0
        %359 = vmatpush1.bf16.msra.mxu0 0
        %360 = vmatprep.subr.bf16.mxu0 0
        %361 = vmatpush1.bf16.msra.mxu0 0
        %362 = vmatprep.subr.bf16.mxu0 0
        %363 = vmatpush1.bf16.msra.mxu0 0
        %364 = vmatprep.subr.bf16.mxu0 0
        %365 = vmatpush1.bf16.msra.mxu0 0
        %366 = vmatprep.mubr.bf16.mxu0 0
        %367 = vmatmul.mubr.bf16.gmra.mrb[0].mxu0 %v325
        %v368 = vpop.f32.mrb[0].mxu0
        %v369 = vadd.f32 %v321, %v368
        %v370 = vpop.f32.mrb[0].mxu0
        %v371 = vadd.f32 %v321, %v370
        %v372 = vpop.f32.mrb[0].mxu0
        %v373 = vpop.f32.mrb[0].mxu0
        %374 = vdwg.mxu0
        %s375 = scalar_lea.vmem %s1, 2
        %v376 = vld [vmem:[%s375] sm:$0x3]
        %377 = vset.pattern.permute.xlu0 3
        %378 = vperm.xlu0 %377, %v225
        %v379 = vpop.permute.xlu0 %378
        %v382 = vsel %vm323, %v376, 0
        %384 = vmatprep.subr.bf16.mxu0 %v332
        %385 = vmatpush1.bf16.msra.mxu0 %v329
        %386 = vmatprep.subr.bf16.mxu0 0
        %387 = vmatpush1.bf16.msra.mxu0 0
        %388 = vmatprep.subr.bf16.mxu0 0
        %389 = vmatpush1.bf16.msra.mxu0 0
        %390 = vmatprep.subr.bf16.mxu0 0
        %391 = vmatpush1.bf16.msra.mxu0 0
        %392 = vmatprep.subr.bf16.mxu0 0
        %393 = vmatpush1.bf16.msra.mxu0 0
        %394 = vmatprep.subr.bf16.mxu0 0
        %395 = vmatpush1.bf16.msra.mxu0 0
        %396 = vmatprep.subr.bf16.mxu0 0
        %397 = vmatpush1.bf16.msra.mxu0 0
        %398 = vmatprep.subr.bf16.mxu0 0
        %399 = vmatpush1.bf16.msra.mxu0 0
        %400 = vmatprep.subr.bf16.mxu0 0
        %401 = vmatpush1.bf16.msra.mxu0 0
        %402 = vmatprep.subr.bf16.mxu0 0
        %403 = vmatpush1.bf16.msra.mxu0 0
        %404 = vmatprep.subr.bf16.mxu0 0
        %405 = vmatpush1.bf16.msra.mxu0 0
        %406 = vmatprep.subr.bf16.mxu0 0
        %407 = vmatpush1.bf16.msra.mxu0 0
        %408 = vmatprep.subr.bf16.mxu0 0
        %409 = vmatpush1.bf16.msra.mxu0 0
        %410 = vmatprep.subr.bf16.mxu0 0
        %411 = vmatpush1.bf16.msra.mxu0 0
        %412 = vmatprep.subr.bf16.mxu0 0
        %413 = vmatpush1.bf16.msra.mxu0 0
        %414 = vmatprep.subr.bf16.mxu0 0
        %415 = vmatpush1.bf16.msra.mxu0 0
        %416 = vmatprep.mubr.bf16.mxu0 0
        %417 = vmatmul.mubr.bf16.gmra.mrb[0].mxu0 %v382
        %v418 = vpop.f32.mrb[0].mxu0
        %v419 = vadd.f32 %v379, %v418
        %v420 = vpop.f32.mrb[0].mxu0
        %v421 = vadd.f32 %v379, %v420
        %v422 = vpop.f32.mrb[0].mxu0
        %v423 = vpop.f32.mrb[0].mxu0
        %424 = vdwg.mxu0
        %427 = vrot.lane.b32.xlu0 %v369, 17
        %v428 = vpop.permute.xlu0 %427
        %429 = vrot.lane.b32.xlu0 %v371, 17
        %v430 = vpop.permute.xlu0 %429
        %vm431 = vcmask 138240
        %v432 = vsel %vm431, %v428, %v430
        %v436 = vsel %vm431, 0.0, %v428
        %v437 = vsel %vm431, %v430, 0.0
        %439 = vset.pattern.permute.xlu0 0
        %440 = vperm.xlu0 %439, %v226
        %v441 = vpop.permute.xlu0 %440
        %v443 = vmul.f32 %v436, %v441
        %v444 = vmul.f32 %v432, %v441
        %v446 = vlaneseq
        %v447 = vshrl.u32 %v446, 7
        %v448 = vsub.s32 0, %v447
        %v449 = vrot.slane %v227, %v448
        %v450 = vlaneseq
        %v451 = vshrl.u32 %v450, 7
        %v452 = vsub.s32 2, %v451
        %v453 = vrot.slane %v227, %v452
        %v456 = vlaneseq
        %v457 = vshrl.u32 %v456, 7
        %v458 = vsub.s32 0, %v457
        %v459 = vrot.slane %v449, %v458
        %v460 = vlaneseq
        %v461 = vshrl.u32 %v460, 7
        %v462 = vsub.s32 0, %v461
        %v463 = vrot.slane %v453, %v462
        %v464 = vmul.f32 %v443, %v459
        %v465 = vmul.f32 %v444, %v463
        %466 = vset.pattern.permute.xlu0 1
        %467 = vperm.xlu0 %466, %v226
        %v468 = vpop.permute.xlu0 %467
        %v470 = vmul.f32 %v436, %v468
        %v471 = vmul.f32 %v432, %v468
        %v472 = vmul.f32 %v437, %v468
        %476 = vrot.lane.b32.xlu0 %v470, 127
        %v477 = vpop.permute.xlu0 %476
        %478 = vrot.lane.b32.xlu0 %v471, 127
        %v479 = vpop.permute.xlu0 %478
        %480 = vrot.lane.b32.xlu0 %v472, 127
        %v481 = vpop.permute.xlu0 %480
        %vm482 = vcmask 1039360
        %v483 = vsel %vm482, %v477, %v479
        %v484 = vsel %vm482, %v479, %v481
        %v487 = vadd.f32 %v464, %v483
        %v488 = vadd.f32 %v465, %v484
        %489 = vset.pattern.permute.xlu0 2
        %490 = vperm.xlu0 %489, %v226
        %v491 = vpop.permute.xlu0 %490
        %v493 = vmul.f32 %v436, %v491
        %v494 = vmul.f32 %v432, %v491
        %v495 = vmul.f32 %v437, %v491
        %v496 = vlaneseq
        %v497 = vshrl.u32 %v496, 7
        %v498 = vsub.s32 1, %v497
        %v499 = vrot.slane %v227, %v498
        %v500 = vlaneseq
        %v501 = vshrl.u32 %v500, 7
        %v502 = vsub.s32 3, %v501
        %v503 = vrot.slane %v227, %v502
        %v506 = vlaneseq
        %v507 = vshrl.u32 %v506, 7
        %v508 = vsub.s32 1, %v507
        %v509 = vrot.slane %v499, %v508
        %v510 = vlaneseq
        %v511 = vshrl.u32 %v510, 7
        %v512 = vsub.s32 1, %v511
        %v513 = vrot.slane %v503, %v512
        %516 = vrot.lane.b32.xlu0 %v509, 2
        %v517 = vpop.permute.xlu0 %516
        %518 = vrot.lane.b32.xlu0 %v513, 2
        %v519 = vpop.permute.xlu0 %518
        %vm520 = vcmask 15360
        %v521 = vsel %vm520, %v517, %v519
        %v525 = vmul.f32 %v493, %v517
        %v526 = vmul.f32 %v494, %v521
        %v527 = vmul.f32 %v495, %v519
        %531 = vrot.lane.b32.xlu0 %v525, 126
        %v532 = vpop.permute.xlu0 %531
        %533 = vrot.lane.b32.xlu0 %v526, 126
        %v534 = vpop.permute.xlu0 %533
        %535 = vrot.lane.b32.xlu0 %v527, 126
        %v536 = vpop.permute.xlu0 %535
        %vm537 = vcmask 1031168
        %v538 = vsel %vm537, %v532, %v534
        %v539 = vsel %vm537, %v534, %v536
        %v542 = vadd.f32 %v487, %v538
        %v543 = vadd.f32 %v488, %v539
        %544 = vset.pattern.permute.xlu0 3
        %545 = vperm.xlu0 %544, %v226
        %v546 = vpop.permute.xlu0 %545
        %v548 = vmul.f32 %v436, %v546
        %v549 = vmul.f32 %v432, %v546
        %v550 = vmul.f32 %v437, %v546
        %553 = vrot.lane.b32.xlu0 %v459, 16
        %v554 = vpop.permute.xlu0 %553
        %555 = vrot.lane.b32.xlu0 %v463, 16
        %v556 = vpop.permute.xlu0 %555
        %vm557 = vcmask 130048
        %v558 = vsel %vm557, %v554, %v556
        %v562 = vmul.f32 %v548, %v554
        %v563 = vmul.f32 %v549, %v558
        %v564 = vmul.f32 %v550, %v556
        %568 = vrot.lane.b32.xlu0 %v562, 112
        %v569 = vpop.permute.xlu0 %568
        %570 = vrot.lane.b32.xlu0 %v563, 112
        %v571 = vpop.permute.xlu0 %570
        %572 = vrot.lane.b32.xlu0 %v564, 112
        %v573 = vpop.permute.xlu0 %572
        %vm574 = vcmask 916480
        %v575 = vsel %vm574, %v569, %v571
        %v576 = vsel %vm574, %v571, %v573
        %v579 = vadd.f32 %v542, %v575
        %v580 = vadd.f32 %v543, %v576
        %581 = vset.pattern.permute.xlu0 4
        %582 = vperm.xlu0 %581, %v226
        %v583 = vpop.permute.xlu0 %582
        %v585 = vmul.f32 %v436, %v583
        %v586 = vmul.f32 %v432, %v583
        %v587 = vmul.f32 %v437, %v583
        %591 = vrot.lane.b32.xlu0 %v585, 111
        %v592 = vpop.permute.xlu0 %591
        %593 = vrot.lane.b32.xlu0 %v586, 111
        %v594 = vpop.permute.xlu0 %593
        %595 = vrot.lane.b32.xlu0 %v587, 111
        %v596 = vpop.permute.xlu0 %595
        %vm597 = vcmask 908288
        %v598 = vsel %vm597, %v592, %v594
        %v599 = vsel %vm597, %v594, %v596
        %v602 = vadd.f32 %v579, %v598
        %v603 = vadd.f32 %v580, %v599
        %604 = vset.pattern.permute.xlu0 5
        %605 = vperm.xlu0 %604, %v226
        %v606 = vpop.permute.xlu0 %605
        %v608 = vmul.f32 %v436, %v606
        %v609 = vmul.f32 %v432, %v606
        %v610 = vmul.f32 %v437, %v606
        %611 = vrot.lane.b32.xlu0 %v509, 18
        %v612 = vpop.permute.xlu0 %611
        %613 = vrot.lane.b32.xlu0 %v513, 18
        %v614 = vpop.permute.xlu0 %613
        %vm615 = vcmask 146432
        %v616 = vsel %vm615, %v612, %v614
        %v620 = vmul.f32 %v608, %v612
        %v621 = vmul.f32 %v609, %v616
        %v622 = vmul.f32 %v610, %v614
        %626 = vrot.lane.b32.xlu0 %v620, 110
        %v627 = vpop.permute.xlu0 %626
        %628 = vrot.lane.b32.xlu0 %v621, 110
        %v629 = vpop.permute.xlu0 %628
        %630 = vrot.lane.b32.xlu0 %v622, 110
        %v631 = vpop.permute.xlu0 %630
        %vm632 = vcmask 900096
        %v633 = vsel %vm632, %v627, %v629
        %v634 = vsel %vm632, %v629, %v631
        %v637 = vadd.f32 %v602, %v633
        %v638 = vadd.f32 %v603, %v634
        %639 = vset.pattern.permute.xlu0 6
        %640 = vperm.xlu0 %639, %v226
        %v641 = vpop.permute.xlu0 %640
        %v643 = vmul.f32 %v436, %v641
        %v644 = vmul.f32 %v432, %v641
        %v645 = vmul.f32 %v437, %v641
        %646 = vrot.lane.b32.xlu0 %v459, 32
        %v647 = vpop.permute.xlu0 %646
        %648 = vrot.lane.b32.xlu0 %v463, 32
        %v649 = vpop.permute.xlu0 %648
        %vm650 = vcmask 261120
        %v651 = vsel %vm650, %v647, %v649
        %v655 = vmul.f32 %v643, %v647
        %v656 = vmul.f32 %v644, %v651
        %v657 = vmul.f32 %v645, %v649
        %661 = vrot.lane.b32.xlu0 %v655, 96
        %v662 = vpop.permute.xlu0 %661
        %663 = vrot.lane.b32.xlu0 %v656, 96
        %v664 = vpop.permute.xlu0 %663
        %665 = vrot.lane.b32.xlu0 %v657, 96
        %v666 = vpop.permute.xlu0 %665
        %vm667 = vcmask 785408
        %v668 = vsel %vm667, %v662, %v664
        %v669 = vsel %vm667, %v664, %v666
        %v672 = vadd.f32 %v637, %v668
        %v673 = vadd.f32 %v638, %v669
        %674 = vset.pattern.permute.xlu0 7
        %675 = vperm.xlu0 %674, %v226
        %v676 = vpop.permute.xlu0 %675
        %v678 = vmul.f32 %v436, %v676
        %v679 = vmul.f32 %v432, %v676
        %v680 = vmul.f32 %v437, %v676
        %684 = vrot.lane.b32.xlu0 %v678, 95
        %v685 = vpop.permute.xlu0 %684
        %686 = vrot.lane.b32.xlu0 %v679, 95
        %v687 = vpop.permute.xlu0 %686
        %688 = vrot.lane.b32.xlu0 %v680, 95
        %v689 = vpop.permute.xlu0 %688
        %vm690 = vcmask 777216
        %v691 = vsel %vm690, %v685, %v687
        %v692 = vsel %vm690, %v687, %v689
        %v695 = vadd.f32 %v672, %v691
        %v696 = vadd.f32 %v673, %v692
        %697 = vset.pattern.permute.xlu0 8
        %698 = vperm.xlu0 %697, %v226
        %v699 = vpop.permute.xlu0 %698
        %v701 = vmul.f32 %v436, %v699
        %v702 = vmul.f32 %v432, %v699
        %v703 = vmul.f32 %v437, %v699
        %704 = vrot.lane.b32.xlu0 %v509, 34
        %v705 = vpop.permute.xlu0 %704
        %706 = vrot.lane.b32.xlu0 %v513, 34
        %v707 = vpop.permute.xlu0 %706
        %vm708 = vcmask 277504
        %v709 = vsel %vm708, %v705, %v707
        %v713 = vmul.f32 %v701, %v705
        %v714 = vmul.f32 %v702, %v709
        %v715 = vmul.f32 %v703, %v707
        %719 = vrot.lane.b32.xlu0 %v713, 94
        %v720 = vpop.permute.xlu0 %719
        %721 = vrot.lane.b32.xlu0 %v714, 94
        %v722 = vpop.permute.xlu0 %721
        %723 = vrot.lane.b32.xlu0 %v715, 94
        %v724 = vpop.permute.xlu0 %723
        %vm725 = vcmask 769024
        %v726 = vsel %vm725, %v720, %v722
        %v727 = vsel %vm725, %v722, %v724
        %v730 = vadd.f32 %v695, %v726
        %v731 = vadd.f32 %v696, %v727
        %732 = vset.pattern.permute.xlu0 4
        %733 = vperm.xlu0 %732, %v225
        %v734 = vpop.permute.xlu0 %733
        %v736 = vadd.f32 %v730, %v734
        %v737 = vadd.f32 %v731, %v734
        %740 = vrot.lane.b32.xlu0 %v419, 17
        %v741 = vpop.permute.xlu0 %740
        %742 = vrot.lane.b32.xlu0 %v421, 17
        %v743 = vpop.permute.xlu0 %742
        %v744 = vsel %vm431, %v741, %v743
        %v748 = vsel %vm431, 0.0, %v741
        %v749 = vsel %vm431, %v743, 0.0
        %750 = vset.pattern.permute.xlu0 9
        %751 = vperm.xlu0 %750, %v226
        %v752 = vpop.permute.xlu0 %751
        %v754 = vmul.f32 %v748, %v752
        %v755 = vmul.f32 %v744, %v752
        %v756 = vmul.f32 %v754, %v459
        %v757 = vmul.f32 %v755, %v463
        %758 = vset.pattern.permute.xlu0 10
        %759 = vperm.xlu0 %758, %v226
        %v760 = vpop.permute.xlu0 %759
        %v762 = vmul.f32 %v748, %v760
        %v763 = vmul.f32 %v744, %v760
        %v764 = vmul.f32 %v749, %v760
        %768 = vrot.lane.b32.xlu0 %v762, 127
        %v769 = vpop.permute.xlu0 %768
        %770 = vrot.lane.b32.xlu0 %v763, 127
        %v771 = vpop.permute.xlu0 %770
        %772 = vrot.lane.b32.xlu0 %v764, 127
        %v773 = vpop.permute.xlu0 %772
        %v774 = vsel %vm482, %v769, %v771
        %v775 = vsel %vm482, %v771, %v773
        %v778 = vadd.f32 %v756, %v774
        %v779 = vadd.f32 %v757, %v775
        %780 = vset.pattern.permute.xlu0 11
        %781 = vperm.xlu0 %780, %v226
        %v782 = vpop.permute.xlu0 %781
        %v784 = vmul.f32 %v748, %v782
        %v785 = vmul.f32 %v744, %v782
        %v786 = vmul.f32 %v749, %v782
        %v787 = vmul.f32 %v784, %v517
        %v788 = vmul.f32 %v785, %v521
        %v789 = vmul.f32 %v786, %v519
        %793 = vrot.lane.b32.xlu0 %v787, 126
        %v794 = vpop.permute.xlu0 %793
        %795 = vrot.lane.b32.xlu0 %v788, 126
        %v796 = vpop.permute.xlu0 %795
        %797 = vrot.lane.b32.xlu0 %v789, 126
        %v798 = vpop.permute.xlu0 %797
        %v799 = vsel %vm537, %v794, %v796
        %v800 = vsel %vm537, %v796, %v798
        %v803 = vadd.f32 %v778, %v799
        %v804 = vadd.f32 %v779, %v800
        %805 = vset.pattern.permute.xlu0 12
        %806 = vperm.xlu0 %805, %v226
        %v807 = vpop.permute.xlu0 %806
        %v809 = vmul.f32 %v748, %v807
        %v810 = vmul.f32 %v744, %v807
        %v811 = vmul.f32 %v749, %v807
        %v812 = vmul.f32 %v809, %v554
        %v813 = vmul.f32 %v810, %v558
        %v814 = vmul.f32 %v811, %v556
        %818 = vrot.lane.b32.xlu0 %v812, 112
        %v819 = vpop.permute.xlu0 %818
        %820 = vrot.lane.b32.xlu0 %v813, 112
        %v821 = vpop.permute.xlu0 %820
        %822 = vrot.lane.b32.xlu0 %v814, 112
        %v823 = vpop.permute.xlu0 %822
        %v824 = vsel %vm574, %v819, %v821
        %v825 = vsel %vm574, %v821, %v823
        %v828 = vadd.f32 %v803, %v824
        %v829 = vadd.f32 %v804, %v825
        %830 = vset.pattern.permute.xlu0 13
        %831 = vperm.xlu0 %830, %v226
        %v832 = vpop.permute.xlu0 %831
        %v834 = vmul.f32 %v748, %v832
        %v835 = vmul.f32 %v744, %v832
        %v836 = vmul.f32 %v749, %v832
        %840 = vrot.lane.b32.xlu0 %v834, 111
        %v841 = vpop.permute.xlu0 %840
        %842 = vrot.lane.b32.xlu0 %v835, 111
        %v843 = vpop.permute.xlu0 %842
        %844 = vrot.lane.b32.xlu0 %v836, 111
        %v845 = vpop.permute.xlu0 %844
        %v846 = vsel %vm597, %v841, %v843
        %v847 = vsel %vm597, %v843, %v845
        %v850 = vadd.f32 %v828, %v846
        %v851 = vadd.f32 %v829, %v847
        %852 = vset.pattern.permute.xlu0 14
        %853 = vperm.xlu0 %852, %v226
        %v854 = vpop.permute.xlu0 %853
        %v856 = vmul.f32 %v748, %v854
        %v857 = vmul.f32 %v744, %v854
        %v858 = vmul.f32 %v749, %v854
        %v859 = vmul.f32 %v856, %v612
        %v860 = vmul.f32 %v857, %v616
        %v861 = vmul.f32 %v858, %v614
        %865 = vrot.lane.b32.xlu0 %v859, 110
        %v866 = vpop.permute.xlu0 %865
        %867 = vrot.lane.b32.xlu0 %v860, 110
        %v868 = vpop.permute.xlu0 %867
        %869 = vrot.lane.b32.xlu0 %v861, 110
        %v870 = vpop.permute.xlu0 %869
        %v871 = vsel %vm632, %v866, %v868
        %v872 = vsel %vm632, %v868, %v870
        %v875 = vadd.f32 %v850, %v871
        %v876 = vadd.f32 %v851, %v872
        %877 = vset.pattern.permute.xlu0 15
        %878 = vperm.xlu0 %877, %v226
        %v879 = vpop.permute.xlu0 %878
        %v881 = vmul.f32 %v748, %v879
        %v882 = vmul.f32 %v744, %v879
        %v883 = vmul.f32 %v749, %v879
        %v884 = vmul.f32 %v881, %v647
        %v885 = vmul.f32 %v882, %v651
        %v886 = vmul.f32 %v883, %v649
        %890 = vrot.lane.b32.xlu0 %v884, 96
        %v891 = vpop.permute.xlu0 %890
        %892 = vrot.lane.b32.xlu0 %v885, 96
        %v893 = vpop.permute.xlu0 %892
        %894 = vrot.lane.b32.xlu0 %v886, 96
        %v895 = vpop.permute.xlu0 %894
        %v896 = vsel %vm667, %v891, %v893
        %v897 = vsel %vm667, %v893, %v895
        %v900 = vadd.f32 %v875, %v896
        %v901 = vadd.f32 %v876, %v897
        %902 = vset.pattern.permute.xlu0 16
        %903 = vperm.xlu0 %902, %v226
        %v904 = vpop.permute.xlu0 %903
        %v906 = vmul.f32 %v748, %v904
        %v907 = vmul.f32 %v744, %v904
        %v908 = vmul.f32 %v749, %v904
        %912 = vrot.lane.b32.xlu0 %v906, 95
        %v913 = vpop.permute.xlu0 %912
        %914 = vrot.lane.b32.xlu0 %v907, 95
        %v915 = vpop.permute.xlu0 %914
        %916 = vrot.lane.b32.xlu0 %v908, 95
        %v917 = vpop.permute.xlu0 %916
        %v918 = vsel %vm690, %v913, %v915
        %v919 = vsel %vm690, %v915, %v917
        %v922 = vadd.f32 %v900, %v918
        %v923 = vadd.f32 %v901, %v919
        %924 = vset.pattern.permute.xlu0 17
        %925 = vperm.xlu0 %924, %v226
        %v926 = vpop.permute.xlu0 %925
        %v928 = vmul.f32 %v748, %v926
        %v929 = vmul.f32 %v744, %v926
        %v930 = vmul.f32 %v749, %v926
        %v931 = vmul.f32 %v928, %v705
        %v932 = vmul.f32 %v929, %v709
        %v933 = vmul.f32 %v930, %v707
        %937 = vrot.lane.b32.xlu0 %v931, 94
        %v938 = vpop.permute.xlu0 %937
        %939 = vrot.lane.b32.xlu0 %v932, 94
        %v940 = vpop.permute.xlu0 %939
        %941 = vrot.lane.b32.xlu0 %v933, 94
        %v942 = vpop.permute.xlu0 %941
        %v943 = vsel %vm725, %v938, %v940
        %v944 = vsel %vm725, %v940, %v942
        %v947 = vadd.f32 %v922, %v943
        %v948 = vadd.f32 %v923, %v944
        %949 = vset.pattern.permute.xlu0 5
        %950 = vperm.xlu0 %949, %v225
        %v951 = vpop.permute.xlu0 %950
        %v953 = vadd.f32 %v947, %v951
        %v954 = vadd.f32 %v948, %v951
        %v955 = vmul.f32 %v736, %v953
        %v956 = vmul.f32 %v737, %v954
        %v957 = vsel %vm231, %v955, 0.0
        %v958 = vsel %vm231, %v956, 0.0
        %v959 = vadd.f32 %v957, %v958
        %960 = vadd.xlane.f32.xlu0 %v959
        %v961 = vpop.xlane.xlu0 %960
        %v962 = vmul.f32 %v961, 0.00390625
        %s963 = scalar_lea.vmem %s1, 12
        %v964 = vld [vmem:[%s963] sm:$0x3]
        %v965 = vpack.c.bf16 %v962, %v962
        %966 = vrot.lane.b32.xlu0 %v225, 122
        %v967 = vpop.permute.xlu0 %966
        %v970 = vsel %vm323, %v964, 0
        %v973 = vsel %vm327, %v965, 0
        %975 = vmatprep.subr.bf16.mxu0 0
        %976 = vmatpush1.bf16.msra.mxu0 %v973
        %977 = vmatprep.subr.bf16.mxu0 0
        %978 = vmatpush1.bf16.msra.mxu0 0
        %979 = vmatprep.subr.bf16.mxu0 0
        %980 = vmatpush1.bf16.msra.mxu0 0
        %981 = vmatprep.subr.bf16.mxu0 0
        %982 = vmatpush1.bf16.msra.mxu0 0
        %983 = vmatprep.subr.bf16.mxu0 0
        %984 = vmatpush1.bf16.msra.mxu0 0
        %985 = vmatprep.subr.bf16.mxu0 0
        %986 = vmatpush1.bf16.msra.mxu0 0
        %987 = vmatprep.subr.bf16.mxu0 0
        %988 = vmatpush1.bf16.msra.mxu0 0
        %989 = vmatprep.subr.bf16.mxu0 0
        %990 = vmatpush1.bf16.msra.mxu0 0
        %991 = vmatprep.subr.bf16.mxu0 0
        %992 = vmatpush1.bf16.msra.mxu0 0
        %993 = vmatprep.subr.bf16.mxu0 0
        %994 = vmatpush1.bf16.msra.mxu0 0
        %995 = vmatprep.subr.bf16.mxu0 0
        %996 = vmatpush1.bf16.msra.mxu0 0
        %997 = vmatprep.subr.bf16.mxu0 0
        %998 = vmatpush1.bf16.msra.mxu0 0
        %999 = vmatprep.subr.bf16.mxu0 0
        %1000 = vmatpush1.bf16.msra.mxu0 0
        %1001 = vmatprep.subr.bf16.mxu0 0
        %1002 = vmatpush1.bf16.msra.mxu0 0
        %1003 = vmatprep.subr.bf16.mxu0 0
        %1004 = vmatpush1.bf16.msra.mxu0 0
        %1005 = vmatprep.subr.bf16.mxu0 0
        %1006 = vmatpush1.bf16.msra.mxu0 0
        %1007 = vmatprep.mubr.bf16.mxu0 0
        %1008 = vmatmul.mubr.bf16.gmra.mrb[0].mxu0 %v970
        %v1009 = vpop.f32.mrb[0].mxu0
        %v1010 = vadd.f32 %v967, %v1009
        %v1011 = vpop.f32.mrb[0].mxu0
        %v1012 = vpop.f32.mrb[0].mxu0
        %v1013 = vpop.f32.mrb[0].mxu0
        %1014 = vdwg.mxu0
        %s1015 = scalar_lea.vmem %s1, 4
        %v1016 = vld [vmem:[%s1015] sm:$0x3]
        %1018 = vset.pattern.permute.xlu0 0
        %1019 = vperm.xlu0 %1018, %v1010
        %v1020 = vpop.permute.xlu0 %1019
        %v1022 = vmul.f32 %v955, %v1020
        %v1023 = vmul.f32 %v956, %v1020
        %v1024 = vpack.c.bf16 %v1022, %v1022
        %v1025 = vpack.c.bf16 %v1023, %v1023
        %1026 = vset.pattern.permute.xlu0 7
        %1027 = vperm.xlu0 %1026, %v225
        %v1028 = vpop.permute.xlu0 %1027
        %v1031 = vsel %vm323, %v1016, 0
        %v1034 = vsel %vm327, %v1024, 0
        %v1037 = vsel %vm327, %v1025, 0
        %1039 = vmatprep.subr.bf16.mxu0 %v1037
        %1040 = vmatpush1.bf16.msra.mxu0 %v1034
        %1041 = vmatprep.subr.bf16.mxu0 0
        %1042 = vmatpush1.bf16.msra.mxu0 0
        %1043 = vmatprep.subr.bf16.mxu0 0
        %1044 = vmatpush1.bf16.msra.mxu0 0
        %1045 = vmatprep.subr.bf16.mxu0 0
        %1046 = vmatpush1.bf16.msra.mxu0 0
        %1047 = vmatprep.subr.bf16.mxu0 0
        %1048 = vmatpush1.bf16.msra.mxu0 0
        %1049 = vmatprep.subr.bf16.mxu0 0
        %1050 = vmatpush1.bf16.msra.mxu0 0
        %1051 = vmatprep.subr.bf16.mxu0 0
        %1052 = vmatpush1.bf16.msra.mxu0 0
        %1053 = vmatprep.subr.bf16.mxu0 0
        %1054 = vmatpush1.bf16.msra.mxu0 0
        %1055 = vmatprep.subr.bf16.mxu0 0
        %1056 = vmatpush1.bf16.msra.mxu0 0
        %1057 = vmatprep.subr.bf16.mxu0 0
        %1058 = vmatpush1.bf16.msra.mxu0 0
        %1059 = vmatprep.subr.bf16.mxu0 0
        %1060 = vmatpush1.bf16.msra.mxu0 0
        %1061 = vmatprep.subr.bf16.mxu0 0
        %1062 = vmatpush1.bf16.msra.mxu0 0
        %1063 = vmatprep.subr.bf16.mxu0 0
        %1064 = vmatpush1.bf16.msra.mxu0 0
        %1065 = vmatprep.subr.bf16.mxu0 0
        %1066 = vmatpush1.bf16.msra.mxu0 0
        %1067 = vmatprep.subr.bf16.mxu0 0
        %1068 = vmatpush1.bf16.msra.mxu0 0
        %1069 = vmatprep.subr.bf16.mxu0 0
        %1070 = vmatpush1.bf16.msra.mxu0 0
        %1071 = vmatprep.mubr.bf16.mxu0 0
        %1072 = vmatmul.mubr.bf16.gmra.mrb[0].mxu0 %v1031
        %v1073 = vpop.f32.mrb[0].mxu0
        %v1074 = vadd.f32 %v1028, %v1073
        %v1075 = vpop.f32.mrb[0].mxu0
        %v1076 = vadd.f32 %v1028, %v1075
        %v1077 = vpop.f32.mrb[0].mxu0
        %v1078 = vpop.f32.mrb[0].mxu0
        %1079 = vdwg.mxu0
        %1080 = vset.pattern.permute.xlu0 13
        %1081 = vperm.xlu0 %1080, %v225
        %v1082 = vpop.permute.xlu0 %1081
        %v1084 = vmul.f32 %v1074, %v1082
        %v1085 = vmul.f32 %v1076, %v1082
        %v1088 = vcombine.low %v1084, %v1085
        %v1090 = vadd.f32 %v224, %v1088
        %v1092 = vcombine.high %v1090, %v1090
        %v1094 = vsel %vm231, %v1090, 0.0
        %v1095 = vrot.slane %v1094, 4
        %v1096 = vadd.f32 %v1094, %v1095
        %v1097 = vrot.slane %v1096, 2
        %v1098 = vadd.f32 %v1096, %v1097
        %v1099 = vrot.slane %v1098, 1
        %v1100 = vadd.f32 %v1098, %v1099
        %v1101 = vsel %vm231, %v1092, 0.0
        %v1102 = vrot.slane %v1101, 4
        %v1103 = vadd.f32 %v1101, %v1102
        %v1104 = vrot.slane %v1103, 2
        %v1105 = vadd.f32 %v1103, %v1104
        %v1106 = vrot.slane %v1105, 1
        %v1107 = vadd.f32 %v1105, %v1106
        %v1108 = vmul.f32 %v1100, 0.25
        %v1109 = vmul.f32 %v1107, 0.25
        %v1110 = vmul.f32 %v1090, %v1090
        %v1112 = vcombine.high %v1110, %v1110
        %v1114 = vsel %vm231, %v1110, 0.0
        %v1115 = vrot.slane %v1114, 4
        %v1116 = vadd.f32 %v1114, %v1115
        %v1117 = vrot.slane %v1116, 2
        %v1118 = vadd.f32 %v1116, %v1117
        %v1119 = vrot.slane %v1118, 1
        %v1120 = vadd.f32 %v1118, %v1119
        %v1121 = vsel %vm231, %v1112, 0.0
        %v1122 = vrot.slane %v1121, 4
        %v1123 = vadd.f32 %v1121, %v1122
        %v1124 = vrot.slane %v1123, 2
        %v1125 = vadd.f32 %v1123, %v1124
        %v1126 = vrot.slane %v1125, 1
        %v1127 = vadd.f32 %v1125, %v1126
        %v1128 = vmul.f32 %v1120, 0.25
        %v1129 = vmul.f32 %v1127, 0.25
        %v1130 = vmul.f32 %v1108, %v1108
        %v1131 = vmul.f32 %v1109, %v1109
        %v1132 = vsub.f32 %v1128, %v1130
        %v1133 = vsub.f32 %v1129, %v1131
        %v1134 = vmax.f32 %v1132, 0.0
        %v1135 = vmax.f32 %v1133, 0.0
        %v1138 = vcombine.low %v1108, %v1109
        %v1140 = vsub.f32 %v1090, %v1138
        %v1141 = vadd.f32 %v1134, 1e-06
        %v1142 = vadd.f32 %v1135, 1e-06
        %v1143 = vrsqrt.pop %v1141
        %v1144 = vrsqrt.pop %v1142
        %v1147 = vcombine.low %v1143, %v1144
        %v1149 = vmul.f32 %v1140, %v1147
        %1150 = vset.pattern.permute.xlu0 8
        %1151 = vperm.xlu0 %1150, %v225
        %v1152 = vpop.permute.xlu0 %1151
        %v1154 = vunpack.c.l.s4 839922192
        %v1155 = vunpack.c.0.s8 %v1154
        %v1156 = vlaneseq
        %v1157 = vshrl.u32 %v1156, 7
        %v1158 = vsub.s32 %v1155, %v1157
        %v1159 = vrot.slane %v1152, %v1158
        %v1161 = vmul.f32 %v1149, %v1159
        %1162 = vset.pattern.permute.xlu0 9
        %1163 = vperm.xlu0 %1162, %v225
        %v1164 = vpop.permute.xlu0 %1163
        %v1166 = vunpack.c.l.s4 839922192
        %v1167 = vunpack.c.0.s8 %v1166
        %v1168 = vlaneseq
        %v1169 = vshrl.u32 %v1168, 7
        %v1170 = vsub.s32 %v1167, %v1169
        %v1171 = vrot.slane %v1164, %v1170
        %v1173 = vadd.f32 %v1161, %v1171
        %v1175 = vcombine.high %v1173, %v1173
        %v1177 = vpack.c.bf16 %v1173, %v1173
        %v1178 = vpack.c.bf16 %v1175, %v1175
        %s1179 = scalar_lea.vmem %s1, 6
        %v1180 = vld [vmem:[%s1179] sm:$0x3]
        %1181 = vset.pattern.permute.xlu0 10
        %1182 = vperm.xlu0 %1181, %v225
        %v1183 = vpop.permute.xlu0 %1182
        %v1186 = vsel %vm323, %v1180, 0
        %v1189 = vsel %vm327, %v1177, 0
        %v1192 = vsel %vm327, %v1178, 0
        %1194 = vmatprep.subr.bf16.mxu0 %v1192
        %1195 = vmatpush1.bf16.msra.mxu0 %v1189
        %1196 = vmatprep.subr.bf16.mxu0 0
        %1197 = vmatpush1.bf16.msra.mxu0 0
        %1198 = vmatprep.subr.bf16.mxu0 0
        %1199 = vmatpush1.bf16.msra.mxu0 0
        %1200 = vmatprep.subr.bf16.mxu0 0
        %1201 = vmatpush1.bf16.msra.mxu0 0
        %1202 = vmatprep.subr.bf16.mxu0 0
        %1203 = vmatpush1.bf16.msra.mxu0 0
        %1204 = vmatprep.subr.bf16.mxu0 0
        %1205 = vmatpush1.bf16.msra.mxu0 0
        %1206 = vmatprep.subr.bf16.mxu0 0
        %1207 = vmatpush1.bf16.msra.mxu0 0
        %1208 = vmatprep.subr.bf16.mxu0 0
        %1209 = vmatpush1.bf16.msra.mxu0 0
        %1210 = vmatprep.subr.bf16.mxu0 0
        %1211 = vmatpush1.bf16.msra.mxu0 0
        %1212 = vmatprep.subr.bf16.mxu0 0
        %1213 = vmatpush1.bf16.msra.mxu0 0
        %1214 = vmatprep.subr.bf16.mxu0 0
        %1215 = vmatpush1.bf16.msra.mxu0 0
        %1216 = vmatprep.subr.bf16.mxu0 0
        %1217 = vmatpush1.bf16.msra.mxu0 0
        %1218 = vmatprep.subr.bf16.mxu0 0
        %1219 = vmatpush1.bf16.msra.mxu0 0
        %1220 = vmatprep.subr.bf16.mxu0 0
        %1221 = vmatpush1.bf16.msra.mxu0 0
        %1222 = vmatprep.subr.bf16.mxu0 0
        %1223 = vmatpush1.bf16.msra.mxu0 0
        %1224 = vmatprep.subr.bf16.mxu0 0
        %1225 = vmatpush1.bf16.msra.mxu0 0
        %1226 = vmatprep.mubr.bf16.mxu0 0
        %1227 = vmatmul.mubr.bf16.gmra.mrb[0].mxu0 %v1186
        %v1228 = vpop.f32.mrb[0].mxu0
        %v1229 = vadd.f32 %v1183, %v1228
        %v1230 = vpop.f32.mrb[0].mxu0
        %v1231 = vadd.f32 %v1183, %v1230
        %v1232 = vpop.f32.mrb[0].mxu0
        %v1233 = vpop.f32.mrb[0].mxu0
        %1234 = vdwg.mxu0
        %s1235 = scalar_lea.vmem %s1, 8
        %v1236 = vld [vmem:[%s1235] sm:$0x3]
        %1237 = vset.pattern.permute.xlu0 11
        %1238 = vperm.xlu0 %1237, %v225
        %v1239 = vpop.permute.xlu0 %1238
        %v1242 = vsel %vm323, %v1236, 0
        %1244 = vmatprep.subr.bf16.mxu0 %v1192
        %1245 = vmatpush1.bf16.msra.mxu0 %v1189
        %1246 = vmatprep.subr.bf16.mxu0 0
        %1247 = vmatpush1.bf16.msra.mxu0 0
        %1248 = vmatprep.subr.bf16.mxu0 0
        %1249 = vmatpush1.bf16.msra.mxu0 0
        %1250 = vmatprep.subr.bf16.mxu0 0
        %1251 = vmatpush1.bf16.msra.mxu0 0
        %1252 = vmatprep.subr.bf16.mxu0 0
        %1253 = vmatpush1.bf16.msra.mxu0 0
        %1254 = vmatprep.subr.bf16.mxu0 0
        %1255 = vmatpush1.bf16.msra.mxu0 0
        %1256 = vmatprep.subr.bf16.mxu0 0
        %1257 = vmatpush1.bf16.msra.mxu0 0
        %1258 = vmatprep.subr.bf16.mxu0 0
        %1259 = vmatpush1.bf16.msra.mxu0 0
        %1260 = vmatprep.subr.bf16.mxu0 0
        %1261 = vmatpush1.bf16.msra.mxu0 0
        %1262 = vmatprep.subr.bf16.mxu0 0
        %1263 = vmatpush1.bf16.msra.mxu0 0
        %1264 = vmatprep.subr.bf16.mxu0 0
        %1265 = vmatpush1.bf16.msra.mxu0 0
        %1266 = vmatprep.subr.bf16.mxu0 0
        %1267 = vmatpush1.bf16.msra.mxu0 0
        %1268 = vmatprep.subr.bf16.mxu0 0
        %1269 = vmatpush1.bf16.msra.mxu0 0
        %1270 = vmatprep.subr.bf16.mxu0 0
        %1271 = vmatpush1.bf16.msra.mxu0 0
        %1272 = vmatprep.subr.bf16.mxu0 0
        %1273 = vmatpush1.bf16.msra.mxu0 0
        %1274 = vmatprep.subr.bf16.mxu0 0
        %1275 = vmatpush1.bf16.msra.mxu0 0
        %1276 = vmatprep.mubr.bf16.mxu0 0
        %1277 = vmatmul.mubr.bf16.gmra.mrb[0].mxu0 %v1242
        %v1278 = vpop.f32.mrb[0].mxu0
        %v1279 = vadd.f32 %v1239, %v1278
        %v1280 = vpop.f32.mrb[0].mxu0
        %v1281 = vadd.f32 %v1239, %v1280
        %v1282 = vpop.f32.mrb[0].mxu0
        %v1283 = vpop.f32.mrb[0].mxu0
        %1284 = vdwg.mxu0
        %v1285 = vmul.f32 %v1229, %v1279
        %v1286 = vmul.f32 %v1231, %v1281
        %s1287 = scalar_lea.vmem %s1, 10
        %v1288 = vld [vmem:[%s1287] sm:$0x3]
        %v1289 = vpack.c.bf16 %v1285, %v1285
        %v1290 = vpack.c.bf16 %v1286, %v1286
        %1291 = vset.pattern.permute.xlu0 12
        %1292 = vperm.xlu0 %1291, %v225
        %v1293 = vpop.permute.xlu0 %1292
        %v1296 = vsel %vm323, %v1288, 0
        %v1299 = vsel %vm327, %v1289, 0
        %v1302 = vsel %vm327, %v1290, 0
        %1304 = vmatprep.subr.bf16.mxu0 %v1302
        %1305 = vmatpush1.bf16.msra.mxu0 %v1299
        %1306 = vmatprep.subr.bf16.mxu0 0
        %1307 = vmatpush1.bf16.msra.mxu0 0
        %1308 = vmatprep.subr.bf16.mxu0 0
        %1309 = vmatpush1.bf16.msra.mxu0 0
        %1310 = vmatprep.subr.bf16.mxu0 0
        %1311 = vmatpush1.bf16.msra.mxu0 0
        %1312 = vmatprep.subr.bf16.mxu0 0
        %1313 = vmatpush1.bf16.msra.mxu0 0
        %1314 = vmatprep.subr.bf16.mxu0 0
        %1315 = vmatpush1.bf16.msra.mxu0 0
        %1316 = vmatprep.subr.bf16.mxu0 0
        %1317 = vmatpush1.bf16.msra.mxu0 0
        %1318 = vmatprep.subr.bf16.mxu0 0
        %1319 = vmatpush1.bf16.msra.mxu0 0
        %1320 = vmatprep.subr.bf16.mxu0 0
        %1321 = vmatpush1.bf16.msra.mxu0 0
        %1322 = vmatprep.subr.bf16.mxu0 0
        %1323 = vmatpush1.bf16.msra.mxu0 0
        %1324 = vmatprep.subr.bf16.mxu0 0
        %1325 = vmatpush1.bf16.msra.mxu0 0
        %1326 = vmatprep.subr.bf16.mxu0 0
        %1327 = vmatpush1.bf16.msra.mxu0 0
        %1328 = vmatprep.subr.bf16.mxu0 0
        %1329 = vmatpush1.bf16.msra.mxu0 0
        %1330 = vmatprep.subr.bf16.mxu0 0
        %1331 = vmatpush1.bf16.msra.mxu0 0
        %1332 = vmatprep.subr.bf16.mxu0 0
        %1333 = vmatpush1.bf16.msra.mxu0 0
        %1334 = vmatprep.subr.bf16.mxu0 0
        %1335 = vmatpush1.bf16.msra.mxu0 0
        %1336 = vmatprep.mubr.bf16.mxu0 0
        %1337 = vmatmul.mubr.bf16.gmra.mrb[0].mxu0 %v1296
        %v1338 = vpop.f32.mrb[0].mxu0
        %v1339 = vadd.f32 %v1293, %v1338
        %v1340 = vpop.f32.mrb[0].mxu0
        %v1341 = vadd.f32 %v1293, %v1340
        %v1342 = vpop.f32.mrb[0].mxu0
        %v1343 = vpop.f32.mrb[0].mxu0
        %1344 = vdwg.mxu0
        %1345 = vset.pattern.permute.xlu0 14
        %1346 = vperm.xlu0 %1345, %v225
        %v1347 = vpop.permute.xlu0 %1346
        %v1349 = vmul.f32 %v1339, %v1347
        %v1350 = vmul.f32 %v1341, %v1347
        %v1353 = vcombine.low %v1349, %v1350
        %v1355 = vadd.f32 %v1090, %v1353
        %1356 = vst [vmem:[%s217] sm:$0xff] %v1355
        %s1357 = sand.u32 %s137, 1
        %s1358 = scalar_lea.sflag [#allocation3], %s1357
        %s1359 = sand.u32 %s137, 1
        %s1360 = smul.addr %s1359, 8
        %s1361 = scalar_lea.vmem [#allocation2], %s1360
        // Predicated region
        $region41: #{tpu_custom_call.1} parent=39 // pred_check
          %p1362 = pneg %p147
        $region42: #{tpu_custom_call.1} parent=39 // pred_check_branch
          %1364 = sbr.rel (%p1362) target = $region44
        $region43: #{tpu_custom_call.1} parent=39 // pred_region
          %s1366 = ssub.s32 128, 128
          %1367 = vsyncadd %s1358, %s1366
          %s1368 = smul.addr %s19, 2
          %s1369 = smul.addr %s1368, 64
          %s1370 = scalar_lea.hbm %s5, %s1369
          %s1372 = sshll.u32 %s1361, 4
          %s1373 = int_to_ptr.vmem [resolvable:$true] %s1372
          %1375 = dma.vmem_to_hbm [thread:$0]  %s1373, 128, %s1370, %s1358
        $region44: #{tpu_custom_call.1} parent=39 // pred_fallthru
          _
      $region40: #{tpu_custom_call.1} parent=5 // pred_fallthru
        _
      %p1376 = scmp.le.s32.totalorder 2, %s14
      // Predicated region
      $region45: #{tpu_custom_call.1} parent=5 // pred_check
        %p1377 = pneg %p1376
      $region46: #{tpu_custom_call.1} parent=5 // pred_check_branch
        %1379 = sbr.rel (%p1377) target = $region48
      $region47: #{tpu_custom_call.1} parent=5 // pred_region
        %s1380 = ssub.s32 %s14, 2
        // Predicated region
        $region49: #{tpu_custom_call.1} parent=47 // pred_check
          %p1381 = pneg %p153
        $region50: #{tpu_custom_call.1} parent=47 // pred_check_branch
          %1383 = sbr.rel (%p1381) target = $region52
        $region51: #{tpu_custom_call.1} parent=47 // pred_region
          %s1384 = sand.u32 %s138, 1
          %s1385 = scalar_lea.sflag [#allocation3], %s1384
          %s1386 = sand.u32 %s138, 1
          %s1387 = smul.addr %s1386, 8
          %s1388 = scalar_lea.vmem [#allocation2], %s1387
          %1389 = dma.done %s1385, 128
        $region52: #{tpu_custom_call.1} parent=47 // pred_fallthru
          _
      $region48: #{tpu_custom_call.1} parent=5 // pred_fallthru
        _
    $region6: #{tpu_custom_call.1} parent=1 // loop_footer
      %s18 = sadd.s32 1, %s14
    $region7: #{tpu_custom_call.1} parent=1 // loop_footer_branch
      %13 = sbr.rel target = $region3
    $region8: #{tpu_custom_call.1} parent=1 // loop_exit
      _
    %1390 = vsyncpa [#allocation3], 1
    %s1391 = scalar_lea.sflag [#allocation3], 1
    %1392 = vsyncpa %s1391, 1

</llo_original>
